<compile_context>
chip_gen: v7x
topology: tpu7x:2x2x1
jax: 0.10.0
libtpu: 0.0.40
codegen_flags: <defaults>
</compile_context>

<pallas_src>
import functools

import jax
import jax.numpy as jnp
from jax.experimental import pallas as pl
from jax.experimental.pallas import tpu as pltpu

_LANES = 128
_SUBLANES = 8


def _round_up(x, m):
    return (x + m - 1) // m * m


# ----------------------------- fused Pallas kernel -------------------------- #

def _fused_decoder_kernel(n_layers, P,
                          ids_ref,      # (B_pad, 1)            int32
                          emb_ref,      # (OUT_pad, P)           bf16
                          w_ih_ref,     # (n_layers, P, 4P)      bf16
                          w_hh_ref,     # (n_layers, P, 4P)      bf16
                          b_ref,        # (n_layers, 1, 4P)      f32  (b_ih + b_hh)
                          fc_w_ref,     # (P, OUT_pad)           bf16
                          fc_b_ref,     # (1, OUT_pad)           f32
                          hidden_ref,   # (n_layers, B_pad, P)   f32  (aliased -> h_out)
                          cell_ref,     # (n_layers, B_pad, P)   f32  (aliased -> c_out)
                          pred_ref,     # (B_pad, OUT_pad)       f32
                          h_out_ref,    # (n_layers, B_pad, P)   f32
                          c_out_ref):   # (n_layers, B_pad, P)   f32
    B_pad = hidden_ref.shape[1]
    OUT_pad = emb_ref.shape[0]
    wdt = emb_ref.dtype

    # -- embedding gather as one MXU matmul: one_hot(ids) @ emb ----------------
    ids = ids_ref[...]                                                  # (B_pad, 1)
    vocab_iota = jax.lax.broadcasted_iota(jnp.int32, (B_pad, OUT_pad), 1)
    one_hot = jnp.where(vocab_iota == ids, 1.0, 0.0).astype(wdt)        # (B_pad, OUT_pad)
    x = jnp.dot(one_hot, emb_ref[...],
                preferred_element_type=jnp.float32)                     # (B_pad, P) f32
    # dropout(embedded) = identity (eval mode)

    # -- stacked LSTM, one time step; layer loop unrolled in Python ------------
    for l in range(n_layers):
        # read full state slot l BEFORE any write to slot l (aliasing-safe;
        # later layers only touch slots > l).
        h_prev = hidden_ref[l]                                          # (B_pad, P)
        c_prev = cell_ref[l]                                            # (B_pad, P)

        gates = (jnp.dot(x.astype(wdt), w_ih_ref[l],
                         preferred_element_type=jnp.float32)
                 + jnp.dot(h_prev.astype(wdt), w_hh_ref[l],
                           preferred_element_type=jnp.float32)
                 + b_ref[l])                                            # (B_pad, 4P)

        # gate order i, f, g, o (PyTorch); each slice is 128-lane aligned.
        i_g = jax.nn.sigmoid(gates[:, 0 * P:1 * P])
        f_g = jax.nn.sigmoid(gates[:, 1 * P:2 * P])
        g_g = jnp.tanh(gates[:, 2 * P:3 * P])
        o_g = jax.nn.sigmoid(gates[:, 3 * P:4 * P])

        c_new = f_g * c_prev + i_g * g_g
        h_new = o_g * jnp.tanh(c_new)

        c_out_ref[l] = c_new.astype(c_out_ref.dtype)
        h_out_ref[l] = h_new.astype(h_out_ref.dtype)
        x = h_new                                   # inter-layer dropout = identity

    # -- final Linear: prediction = h_top @ W_fc^T + b_fc ----------------------
    pred_ref[...] = (jnp.dot(x.astype(wdt), fc_w_ref[...],
                             preferred_element_type=jnp.float32)
                     + fc_b_ref[...]).astype(pred_ref.dtype)


# ------------------------------- wrapper ------------------------------------ #

@functools.partial(jax.jit, static_argnames=("output_dim",))
def decoder_forward(params, input_ids, hidden, cell, *, output_dim):
    """
    input_ids: (B,) int32
    hidden:    (n_layers, B, H) f32
    cell:      (n_layers, B, H) f32
    returns (prediction (B, output_dim), hidden, cell)   -- same shapes as PyTorch
    """
    n_layers, B, H = hidden.shape
    P = params["w_ih"].shape[1]                 # padded feature dim (multiple of 128)
    OUT_pad = params["embedding"].shape[0]      # padded vocab (multiple of 128)
    B_pad = max(_SUBLANES, _round_up(B, _SUBLANES))

    # pad into lane/sublane-dense shapes; padded rows/cols are inert (see kernel).
    ids_pad = jnp.zeros((B_pad, 1), jnp.int32).at[:B, 0].set(input_ids.astype(jnp.int32))
    h_pad = jnp.zeros((n_layers, B_pad, P), jnp.float32).at[:, :B, :H].set(hidden)
    c_pad = jnp.zeros((n_layers, B_pad, P), jnp.float32).at[:, :B, :H].set(cell)

    vmem = pl.BlockSpec(memory_space=pltpu.MemorySpace.VMEM)

    inputs = (ids_pad, params["embedding"], params["w_ih"], params["w_hh"],
              params["b"], params["fc_w_t"], params["fc_b"], h_pad, c_pad)

    flops = 2 * B_pad * OUT_pad * P                          # one-hot embedding matmul
    flops += n_layers * 2 * (2 * B_pad * P * 4 * P)          # two dots per layer
    flops += 2 * B_pad * P * OUT_pad                         # final Linear
    transcendentals = n_layers * B_pad * 5 * P               # 4 gates + tanh(c)
    out_bytes = 4 * (B_pad * OUT_pad + 2 * n_layers * B_pad * P)
    in_bytes = sum(int(a.size) * a.dtype.itemsize for a in inputs)
    bytes_accessed = in_bytes + out_bytes

    # explicit scoped-VMEM budget with headroom (scales with problem size).
    vmem_limit = int(min(64 * 2 ** 20, max(8 * 2 ** 20, 4 * bytes_accessed)))

    kernel = functools.partial(_fused_decoder_kernel, n_layers, P)

    pred, h_out, c_out = pl.pallas_call(
        kernel,
        out_shape=(
            jax.ShapeDtypeStruct((B_pad, OUT_pad), jnp.float32),
            jax.ShapeDtypeStruct((n_layers, B_pad, P), jnp.float32),
            jax.ShapeDtypeStruct((n_layers, B_pad, P), jnp.float32),
        ),
        in_specs=[vmem] * len(inputs),
        out_specs=(vmem, vmem, vmem),
        # h_pad / c_pad are jit-internal temporaries -> aliasing them to the state
        # outputs lets XLA update state in place without touching caller buffers.
        input_output_aliases={7: 1, 8: 2},
        compiler_params=pltpu.CompilerParams(vmem_limit_bytes=vmem_limit),
        cost_estimate=pl.CostEstimate(
            flops=int(flops),
            transcendentals=int(transcendentals),
            bytes_accessed=int(bytes_accessed),
        ),
    )(*inputs)

    return pred[:B, :output_dim], h_out[:, :B, :H], c_out[:, :B, :H]


# ------------------------------- parameters --------------------------------- #

def init_decoder_params(key, output_dim, emb_dim, hid_dim, n_layers,
                        dtype=jnp.float32):
    """Synthetic f32 parameters with exact nn.Embedding / nn.LSTM / nn.Linear shapes."""
    keys = jax.random.split(key, 3 + 4 * n_layers)
    params = {"embedding": 0.1 * jax.random.normal(keys[0], (output_dim, emb_dim), dtype)}
    layers = []
    kidx = 1
    for layer in range(n_layers):
        in_dim = emb_dim if layer == 0 else hid_dim
        layers.append({
            "w_ih": 0.1 * jax.random.normal(keys[kidx + 0], (4 * hid_dim, in_dim), dtype),
            "w_hh": 0.1 * jax.random.normal(keys[kidx + 1], (4 * hid_dim, hid_dim), dtype),
            "b_ih": 0.1 * jax.random.normal(keys[kidx + 2], (4 * hid_dim,), dtype),
            "b_hh": 0.1 * jax.random.normal(keys[kidx + 3], (4 * hid_dim,), dtype),
        })
        kidx += 4
    params["lstm"] = layers
    params["fc_w"] = 0.1 * jax.random.normal(keys[-2], (output_dim, hid_dim), dtype)
    params["fc_b"] = 0.1 * jax.random.normal(keys[-1], (output_dim,), dtype)
    return params


def _pad_gate_weight(w, in_dim, H, P):
    """(4H, in_dim) PyTorch gate-major weight -> (P, 4P) transposed, gate blocks
    laid out so gate k occupies lane columns [k*P, k*P + H)."""
    out = jnp.zeros((P, 4 * P), w.dtype)
    for k in range(4):
        out = out.at[:in_dim, k * P:k * P + H].set(w[k * H:(k + 1) * H, :].T)
    return out


def _pad_gate_bias(b, H, P):
    out = jnp.zeros((4 * P,), b.dtype)
    for k in range(4):
        out = out.at[k * P:k * P + H].set(b[k * H:(k + 1) * H])
    return out.reshape(1, 4 * P)


def prepare_params(raw, weight_dtype=jnp.bfloat16):
    """Pad / transpose / fuse / cast raw PyTorch-shaped params for the kernel."""
    vocab, emb_dim = raw["embedding"].shape
    hid_dim = raw["lstm"][0]["w_hh"].shape[1]
    P = _round_up(max(emb_dim, hid_dim), _LANES)      # shared padded feature dim
    OUT_pad = _round_up(vocab, _LANES)

    emb = jnp.zeros((OUT_pad, P), jnp.float32).at[:vocab, :emb_dim].set(raw["embedding"])

    w_ih, w_hh, bias = [], [], []
    for layer in raw["lstm"]:
        in_dim = layer["w_ih"].shape[1]
        w_ih.append(_pad_gate_weight(layer["w_ih"], in_dim, hid_dim, P))
        w_hh.append(_pad_gate_weight(layer["w_hh"], hid_dim, hid_dim, P))
        bias.append(_pad_gate_bias(layer["b_ih"] + layer["b_hh"], hid_dim, P))

    fc_w_t = jnp.zeros((P, OUT_pad), jnp.float32).at[:hid_dim, :vocab].set(raw["fc_w"].T)
    fc_b = jnp.zeros((1, OUT_pad), jnp.float32).at[0, :vocab].set(raw["fc_b"])

    return {
        "embedding": emb.astype(weight_dtype),            # (OUT_pad, P)
        "w_ih": jnp.stack(w_ih).astype(weight_dtype),     # (n_layers, P, 4P)
        "w_hh": jnp.stack(w_hh).astype(weight_dtype),     # (n_layers, P, 4P)
        "b": jnp.stack(bias).astype(jnp.float32),         # (n_layers, 1, 4P)
        "fc_w_t": fc_w_t.astype(weight_dtype),            # (P, OUT_pad)
        "fc_b": fc_b,                                     # (1, OUT_pad) f32
    }


# --------------------------- pure-JAX references ----------------------------- #

def decoder_forward_ref_prepared(params, input_ids, hidden, cell, output_dim):
    """Reference that uses the same padded bf16 weights and casts as the kernel."""
    n_layers, B, H = hidden.shape
    P = params["w_ih"].shape[1]
    wdt = params["w_ih"].dtype
    x = jnp.take(params["embedding"], input_ids, axis=0).astype(jnp.float32)   # (B, P)
    h_pad = jnp.zeros((n_layers, B, P), jnp.float32).at[:, :, :H].set(hidden)
    c_pad = jnp.zeros((n_layers, B, P), jnp.float32).at[:, :, :H].set(cell)
    new_h, new_c = [], []
    for l in range(n_layers):
        gates = (jnp.dot(x.astype(wdt), params["w_ih"][l], preferred_element_type=jnp.float32)
                 + jnp.dot(h_pad[l].astype(wdt), params["w_hh"][l], preferred_element_type=jnp.float32)
                 + params["b"][l])
        i = jax.nn.sigmoid(gates[:, 0 * P:1 * P])
        f = jax.nn.sigmoid(gates[:, 1 * P:2 * P])
        g = jnp.tanh(gates[:, 2 * P:3 * P])
        o = jax.nn.sigmoid(gates[:, 3 * P:4 * P])
        c = f * c_pad[l] + i * g
        h = o * jnp.tanh(c)
        new_h.append(h)
        new_c.append(c)
        x = h
    pred = (jnp.dot(x.astype(wdt), params["fc_w_t"], preferred_element_type=jnp.float32)
            + params["fc_b"])
    return pred[:, :output_dim], jnp.stack(new_h)[:, :, :H], jnp.stack(new_c)[:, :, :H]


def decoder_forward_ref_f32(raw, input_ids, hidden, cell):
    """Full-f32 reference matching the PyTorch Decoder math exactly (eval mode)."""
    H = hidden.shape[-1]
    x = jnp.take(raw["embedding"], input_ids, axis=0)
    new_h, new_c = [], []
    for l, p in enumerate(raw["lstm"]):
        gates = x @ p["w_ih"].T + hidden[l] @ p["w_hh"].T + p["b_ih"] + p["b_hh"]
        i = jax.nn.sigmoid(gates[:, 0 * H:1 * H])
        f = jax.nn.sigmoid(gates[:, 1 * H:2 * H])
        g = jnp.tanh(gates[:, 2 * H:3 * H])
        o = jax.nn.sigmoid(gates[:, 3 * H:4 * H])
        c = f * cell[l] + i * g
        h = o * jnp.tanh(c)
        new_h.append(h)
        new_c.append(c)
        x = h
    pred = x @ raw["fc_w"].T + raw["fc_b"]
    return pred, jnp.stack(new_h), jnp.stack(new_c)


# ----------------------------------- main ------------------------------------ #

if __name__ == "__main__":
    OUTPUT_DIM = 32   # vocab size
    EMB_DIM = 16
    HID_DIM = 32
    N_LAYERS = 2
    BATCH = 2

    key = jax.random.PRNGKey(0)
    k_param, k_inp, k_h, k_c = jax.random.split(key, 4)

    raw_params = init_decoder_params(k_param, OUTPUT_DIM, EMB_DIM, HID_DIM, N_LAYERS)
    params = prepare_params(raw_params)

    input_ids = jax.random.randint(k_inp, (BATCH,), 0, OUTPUT_DIM, dtype=jnp.int32)
    hidden = 0.1 * jax.random.normal(k_h, (N_LAYERS, BATCH, HID_DIM), jnp.float32)
    cell = 0.1 * jax.random.normal(k_c, (N_LAYERS, BATCH, HID_DIM), jnp.float32)

    # references
    pred_r, h_r, c_r = decoder_forward_ref_prepared(params, input_ids, hidden, cell, OUTPUT_DIM)
    pred_f, h_f, c_f = decoder_forward_ref_f32(raw_params, input_ids, hidden, cell)

    pred, h_out, c_out = decoder_forward(params, input_ids, hidden, cell,
                                         output_dim=OUTPUT_DIM)
    jax.block_until_ready((pred, h_out, c_out))

    assert pred.shape == (BATCH, OUTPUT_DIM)
    assert h_out.shape == (N_LAYERS, BATCH, HID_DIM)
    assert c_out.shape == (N_LAYERS, BATCH, HID_DIM)

    # exact-path check (same bf16 weights / casts as the kernel)
    assert jnp.allclose(pred, pred_r, atol=1e-4, rtol=1e-4)
    assert jnp.allclose(h_out, h_r, atol=1e-4, rtol=1e-4)
    assert jnp.allclose(c_out, c_r, atol=1e-4, rtol=1e-4)

    # module-semantics check against full-f32 PyTorch-equivalent math
    assert jnp.allclose(pred, pred_f, atol=2e-2)
    assert jnp.allclose(h_out, h_f, atol=2e-2)
    assert jnp.allclose(c_out, c_f, atol=2e-2)

    print("KERNEL_OK")
</pallas_src>

<mosaic_0001>
module attributes {stable_mosaic.version = 11 : i64} {
  func.func @_fused_decoder_kernel(%arg0: memref<8x1xi32, #tpu.memory_space<vmem>>, %arg1: memref<128x128xbf16, #tpu.memory_space<vmem>>, %arg2: memref<2x128x512xbf16, #tpu.memory_space<vmem>>, %arg3: memref<2x128x512xbf16, #tpu.memory_space<vmem>>, %arg4: memref<2x1x512xf32, #tpu.memory_space<vmem>>, %arg5: memref<128x128xbf16, #tpu.memory_space<vmem>>, %arg6: memref<1x128xf32, #tpu.memory_space<vmem>>, %arg7: memref<2x8x128xf32, #tpu.memory_space<vmem>>, %arg8: memref<2x8x128xf32, #tpu.memory_space<vmem>>, %arg9: memref<8x128xf32, #tpu.memory_space<vmem>>, %arg10: memref<2x8x128xf32, #tpu.memory_space<vmem>>, %arg11: memref<2x8x128xf32, #tpu.memory_space<vmem>>) attributes {dimension_semantics = [], scalar_prefetch = 0 : i64, scratch_operands = 0 : i64, tpu.core_type = #tpu.core_type<tc>} {
    %c0 = arith.constant 0 : index
    %c0_0 = arith.constant 0 : index
    %0 = vector.load %arg0[%c0, %c0_0] : memref<8x1xi32, #tpu.memory_space<vmem>>, vector<8x1xi32>
    %1 = tpu.iota {dimensions = array<i32: 1>} : vector<8x128xi32>
    %2 = vector.broadcast %0 : vector<8x1xi32> to vector<8x128xi32>
    %3 = arith.cmpi eq, %1, %2 : vector<8x128xi32>
    %cst = arith.constant 1.000000e+00 : f32
    %cst_1 = arith.constant 0.000000e+00 : f32
    %4 = vector.broadcast %cst : f32 to vector<8x128xf32>
    %5 = vector.broadcast %cst_1 : f32 to vector<8x128xf32>
    %6 = arith.select %3, %4, %5 : vector<8x128xi1>, vector<8x128xf32>
    %7 = arith.truncf %6 : vector<8x128xf32> to vector<8x128xbf16>
    %c0_2 = arith.constant 0 : index
    %c0_3 = arith.constant 0 : index
    %8 = vector.load %arg1[%c0_2, %c0_3] : memref<128x128xbf16, #tpu.memory_space<vmem>>, vector<128x128xbf16>
    %cst_4 = arith.constant dense<0.000000e+00> : vector<8x128xf32>
    %9 = tpu.matmul %7, %8, %cst_4 {dimension_numbers = #tpu.dot_dimension_numbers<[1], [0], [0], [1], [0, 0, 1, 1], [], []>} : vector<8x128xbf16>, vector<128x128xbf16>, vector<8x128xf32> -> vector<8x128xf32>
    %c0_5 = arith.constant 0 : index
    %c0_6 = arith.constant 0 : index
    %c0_7 = arith.constant 0 : index
    %10 = vector.load %arg7[%c0_5, %c0_6, %c0_7] : memref<2x8x128xf32, #tpu.memory_space<vmem>>, vector<1x8x128xf32>
    %11 = vector.shape_cast %10 : vector<1x8x128xf32> to vector<8x128xf32>
    %c0_8 = arith.constant 0 : index
    %c0_9 = arith.constant 0 : index
    %c0_10 = arith.constant 0 : index
    %12 = vector.load %arg8[%c0_8, %c0_9, %c0_10] : memref<2x8x128xf32, #tpu.memory_space<vmem>>, vector<1x8x128xf32>
    %13 = vector.shape_cast %12 : vector<1x8x128xf32> to vector<8x128xf32>
    %14 = arith.truncf %9 : vector<8x128xf32> to vector<8x128xbf16>
    %c0_11 = arith.constant 0 : index
    %c0_12 = arith.constant 0 : index
    %c0_13 = arith.constant 0 : index
    %15 = vector.load %arg2[%c0_11, %c0_12, %c0_13] : memref<2x128x512xbf16, #tpu.memory_space<vmem>>, vector<1x128x512xbf16>
    %16 = vector.shape_cast %15 : vector<1x128x512xbf16> to vector<128x512xbf16>
    %cst_14 = arith.constant dense<0.000000e+00> : vector<8x512xf32>
    %17 = tpu.matmul %14, %16, %cst_14 {dimension_numbers = #tpu.dot_dimension_numbers<[1], [0], [0], [1], [0, 0, 1, 1], [], []>} : vector<8x128xbf16>, vector<128x512xbf16>, vector<8x512xf32> -> vector<8x512xf32>
    %18 = arith.truncf %11 : vector<8x128xf32> to vector<8x128xbf16>
    %c0_15 = arith.constant 0 : index
    %c0_16 = arith.constant 0 : index
    %c0_17 = arith.constant 0 : index
    %19 = vector.load %arg3[%c0_15, %c0_16, %c0_17] : memref<2x128x512xbf16, #tpu.memory_space<vmem>>, vector<1x128x512xbf16>
    %20 = vector.shape_cast %19 : vector<1x128x512xbf16> to vector<128x512xbf16>
    %cst_18 = arith.constant dense<0.000000e+00> : vector<8x512xf32>
    %21 = tpu.matmul %18, %20, %cst_18 {dimension_numbers = #tpu.dot_dimension_numbers<[1], [0], [0], [1], [0, 0, 1, 1], [], []>} : vector<8x128xbf16>, vector<128x512xbf16>, vector<8x512xf32> -> vector<8x512xf32>
    %22 = arith.addf %17, %21 : vector<8x512xf32>
    %c0_19 = arith.constant 0 : index
    %c0_20 = arith.constant 0 : index
    %c0_21 = arith.constant 0 : index
    %23 = vector.load %arg4[%c0_19, %c0_20, %c0_21] : memref<2x1x512xf32, #tpu.memory_space<vmem>>, vector<1x1x512xf32>
    %24 = vector.shape_cast %23 : vector<1x1x512xf32> to vector<1x512xf32>
    %25 = vector.broadcast %24 : vector<1x512xf32> to vector<8x512xf32>
    %26 = arith.addf %22, %25 : vector<8x512xf32>
    %27 = vector.extract_strided_slice %26 {offsets = [0, 0], sizes = [8, 128], strides = [1, 1]} : vector<8x512xf32> to vector<8x128xf32>
    %28 = arith.negf %27 : vector<8x128xf32>
    %29 = math.exp %28 : vector<8x128xf32>
    %cst_22 = arith.constant 1.000000e+00 : f32
    %30 = vector.broadcast %cst_22 : f32 to vector<8x128xf32>
    %31 = arith.addf %30, %29 : vector<8x128xf32>
    %32 = arith.divf %30, %31 : vector<8x128xf32>
    %33 = vector.extract_strided_slice %26 {offsets = [0, 128], sizes = [8, 128], strides = [1, 1]} : vector<8x512xf32> to vector<8x128xf32>
    %34 = arith.negf %33 : vector<8x128xf32>
    %35 = math.exp %34 : vector<8x128xf32>
    %cst_23 = arith.constant 1.000000e+00 : f32
    %36 = vector.broadcast %cst_23 : f32 to vector<8x128xf32>
    %37 = arith.addf %36, %35 : vector<8x128xf32>
    %38 = arith.divf %36, %37 : vector<8x128xf32>
    %39 = vector.extract_strided_slice %26 {offsets = [0, 256], sizes = [8, 128], strides = [1, 1]} : vector<8x512xf32> to vector<8x128xf32>
    %40 = math.tanh %39 : vector<8x128xf32>
    %41 = vector.extract_strided_slice %26 {offsets = [0, 384], sizes = [8, 128], strides = [1, 1]} : vector<8x512xf32> to vector<8x128xf32>
    %42 = arith.negf %41 : vector<8x128xf32>
    %43 = math.exp %42 : vector<8x128xf32>
    %cst_24 = arith.constant 1.000000e+00 : f32
    %44 = vector.broadcast %cst_24 : f32 to vector<8x128xf32>
    %45 = arith.addf %44, %43 : vector<8x128xf32>
    %46 = arith.divf %44, %45 : vector<8x128xf32>
    %47 = arith.mulf %38, %13 : vector<8x128xf32>
    %48 = arith.mulf %32, %40 : vector<8x128xf32>
    %49 = arith.addf %47, %48 : vector<8x128xf32>
    %50 = math.tanh %49 : vector<8x128xf32>
    %51 = arith.mulf %46, %50 : vector<8x128xf32>
    %c0_25 = arith.constant 0 : index
    %c0_26 = arith.constant 0 : index
    %c0_27 = arith.constant 0 : index
    %52 = vector.load %arg11[%c0_25, %c0_26, %c0_27] : memref<2x8x128xf32, #tpu.memory_space<vmem>>, vector<1x8x128xf32>
    %53 = vector.shape_cast %52 : vector<1x8x128xf32> to vector<8x128xf32>
    %54 = vector.shape_cast %49 : vector<8x128xf32> to vector<1x8x128xf32>
    tpu.vector_store %arg11[%c0_25, %c0_26, %c0_27], %54 {strides = array<i32>} : memref<2x8x128xf32, #tpu.memory_space<vmem>>, vector<1x8x128xf32>,
    %c0_28 = arith.constant 0 : index
    %c0_29 = arith.constant 0 : index
    %c0_30 = arith.constant 0 : index
    %55 = vector.load %arg10[%c0_28, %c0_29, %c0_30] : memref<2x8x128xf32, #tpu.memory_space<vmem>>, vector<1x8x128xf32>
    %56 = vector.shape_cast %55 : vector<1x8x128xf32> to vector<8x128xf32>
    %57 = vector.shape_cast %51 : vector<8x128xf32> to vector<1x8x128xf32>
    tpu.vector_store %arg10[%c0_28, %c0_29, %c0_30], %57 {strides = array<i32>} : memref<2x8x128xf32, #tpu.memory_space<vmem>>, vector<1x8x128xf32>,
    %c1 = arith.constant 1 : index
    %c0_31 = arith.constant 0 : index
    %c0_32 = arith.constant 0 : index
    %58 = vector.load %arg7[%c1, %c0_31, %c0_32] : memref<2x8x128xf32, #tpu.memory_space<vmem>>, vector<1x8x128xf32>
    %59 = vector.shape_cast %58 : vector<1x8x128xf32> to vector<8x128xf32>
    %c1_33 = arith.constant 1 : index
    %c0_34 = arith.constant 0 : index
    %c0_35 = arith.constant 0 : index
    %60 = vector.load %arg8[%c1_33, %c0_34, %c0_35] : memref<2x8x128xf32, #tpu.memory_space<vmem>>, vector<1x8x128xf32>
    %61 = vector.shape_cast %60 : vector<1x8x128xf32> to vector<8x128xf32>
    %62 = arith.truncf %51 : vector<8x128xf32> to vector<8x128xbf16>
    %c1_36 = arith.constant 1 : index
    %c0_37 = arith.constant 0 : index
    %c0_38 = arith.constant 0 : index
    %63 = vector.load %arg2[%c1_36, %c0_37, %c0_38] : memref<2x128x512xbf16, #tpu.memory_space<vmem>>, vector<1x128x512xbf16>
    %64 = vector.shape_cast %63 : vector<1x128x512xbf16> to vector<128x512xbf16>
    %cst_39 = arith.constant dense<0.000000e+00> : vector<8x512xf32>
    %65 = tpu.matmul %62, %64, %cst_39 {dimension_numbers = #tpu.dot_dimension_numbers<[1], [0], [0], [1], [0, 0, 1, 1], [], []>} : vector<8x128xbf16>, vector<128x512xbf16>, vector<8x512xf32> -> vector<8x512xf32>
    %66 = arith.truncf %59 : vector<8x128xf32> to vector<8x128xbf16>
    %c1_40 = arith.constant 1 : index
    %c0_41 = arith.constant 0 : index
    %c0_42 = arith.constant 0 : index
    %67 = vector.load %arg3[%c1_40, %c0_41, %c0_42] : memref<2x128x512xbf16, #tpu.memory_space<vmem>>, vector<1x128x512xbf16>
    %68 = vector.shape_cast %67 : vector<1x128x512xbf16> to vector<128x512xbf16>
    %cst_43 = arith.constant dense<0.000000e+00> : vector<8x512xf32>
    %69 = tpu.matmul %66, %68, %cst_43 {dimension_numbers = #tpu.dot_dimension_numbers<[1], [0], [0], [1], [0, 0, 1, 1], [], []>} : vector<8x128xbf16>, vector<128x512xbf16>, vector<8x512xf32> -> vector<8x512xf32>
    %70 = arith.addf %65, %69 : vector<8x512xf32>
    %c1_44 = arith.constant 1 : index
    %c0_45 = arith.constant 0 : index
    %c0_46 = arith.constant 0 : index
    %71 = vector.load %arg4[%c1_44, %c0_45, %c0_46] : memref<2x1x512xf32, #tpu.memory_space<vmem>>, vector<1x1x512xf32>
    %72 = vector.shape_cast %71 : vector<1x1x512xf32> to vector<1x512xf32>
    %73 = vector.broadcast %72 : vector<1x512xf32> to vector<8x512xf32>
    %74 = arith.addf %70, %73 : vector<8x512xf32>
    %75 = vector.extract_strided_slice %74 {offsets = [0, 0], sizes = [8, 128], strides = [1, 1]} : vector<8x512xf32> to vector<8x128xf32>
    %76 = arith.negf %75 : vector<8x128xf32>
    %77 = math.exp %76 : vector<8x128xf32>
    %cst_47 = arith.constant 1.000000e+00 : f32
    %78 = vector.broadcast %cst_47 : f32 to vector<8x128xf32>
    %79 = arith.addf %78, %77 : vector<8x128xf32>
    %80 = arith.divf %78, %79 : vector<8x128xf32>
    %81 = vector.extract_strided_slice %74 {offsets = [0, 128], sizes = [8, 128], strides = [1, 1]} : vector<8x512xf32> to vector<8x128xf32>
    %82 = arith.negf %81 : vector<8x128xf32>
    %83 = math.exp %82 : vector<8x128xf32>
    %cst_48 = arith.constant 1.000000e+00 : f32
    %84 = vector.broadcast %cst_48 : f32 to vector<8x128xf32>
    %85 = arith.addf %84, %83 : vector<8x128xf32>
    %86 = arith.divf %84, %85 : vector<8x128xf32>
    %87 = vector.extract_strided_slice %74 {offsets = [0, 256], sizes = [8, 128], strides = [1, 1]} : vector<8x512xf32> to vector<8x128xf32>
    %88 = math.tanh %87 : vector<8x128xf32>
    %89 = vector.extract_strided_slice %74 {offsets = [0, 384], sizes = [8, 128], strides = [1, 1]} : vector<8x512xf32> to vector<8x128xf32>
    %90 = arith.negf %89 : vector<8x128xf32>
    %91 = math.exp %90 : vector<8x128xf32>
    %cst_49 = arith.constant 1.000000e+00 : f32
    %92 = vector.broadcast %cst_49 : f32 to vector<8x128xf32>
    %93 = arith.addf %92, %91 : vector<8x128xf32>
    %94 = arith.divf %92, %93 : vector<8x128xf32>
    %95 = arith.mulf %86, %61 : vector<8x128xf32>
    %96 = arith.mulf %80, %88 : vector<8x128xf32>
    %97 = arith.addf %95, %96 : vector<8x128xf32>
    %98 = math.tanh %97 : vector<8x128xf32>
    %99 = arith.mulf %94, %98 : vector<8x128xf32>
    %c1_50 = arith.constant 1 : index
    %c0_51 = arith.constant 0 : index
    %c0_52 = arith.constant 0 : index
    %100 = vector.load %arg11[%c1_50, %c0_51, %c0_52] : memref<2x8x128xf32, #tpu.memory_space<vmem>>, vector<1x8x128xf32>
    %101 = vector.shape_cast %100 : vector<1x8x128xf32> to vector<8x128xf32>
    %102 = vector.shape_cast %97 : vector<8x128xf32> to vector<1x8x128xf32>
    tpu.vector_store %arg11[%c1_50, %c0_51, %c0_52], %102 {strides = array<i32>} : memref<2x8x128xf32, #tpu.memory_space<vmem>>, vector<1x8x128xf32>,
    %c1_53 = arith.constant 1 : index
    %c0_54 = arith.constant 0 : index
    %c0_55 = arith.constant 0 : index
    %103 = vector.load %arg10[%c1_53, %c0_54, %c0_55] : memref<2x8x128xf32, #tpu.memory_space<vmem>>, vector<1x8x128xf32>
    %104 = vector.shape_cast %103 : vector<1x8x128xf32> to vector<8x128xf32>
    %105 = vector.shape_cast %99 : vector<8x128xf32> to vector<1x8x128xf32>
    tpu.vector_store %arg10[%c1_53, %c0_54, %c0_55], %105 {strides = array<i32>} : memref<2x8x128xf32, #tpu.memory_space<vmem>>, vector<1x8x128xf32>,
    %106 = arith.truncf %99 : vector<8x128xf32> to vector<8x128xbf16>
    %c0_56 = arith.constant 0 : index
    %c0_57 = arith.constant 0 : index
    %107 = vector.load %arg5[%c0_56, %c0_57] : memref<128x128xbf16, #tpu.memory_space<vmem>>, vector<128x128xbf16>
    %cst_58 = arith.constant dense<0.000000e+00> : vector<8x128xf32>
    %108 = tpu.matmul %106, %107, %cst_58 {dimension_numbers = #tpu.dot_dimension_numbers<[1], [0], [0], [1], [0, 0, 1, 1], [], []>} : vector<8x128xbf16>, vector<128x128xbf16>, vector<8x128xf32> -> vector<8x128xf32>
    %c0_59 = arith.constant 0 : index
    %c0_60 = arith.constant 0 : index
    %109 = vector.load %arg6[%c0_59, %c0_60] : memref<1x128xf32, #tpu.memory_space<vmem>>, vector<1x128xf32>
    %110 = vector.broadcast %109 : vector<1x128xf32> to vector<8x128xf32>
    %111 = arith.addf %108, %110 : vector<8x128xf32>
    %c0_61 = arith.constant 0 : index
    %c0_62 = arith.constant 0 : index
    %112 = vector.load %arg9[%c0_61, %c0_62] : memref<8x128xf32, #tpu.memory_space<vmem>>, vector<8x128xf32>
    tpu.vector_store %arg9[%c0_61, %c0_62], %111 {strides = array<i32>} : memref<8x128xf32, #tpu.memory_space<vmem>>, vector<8x128xf32>,
    return
  }
}

</mosaic_0001>

<llo_original>
// kernel: decoder_forward.1
$region0: #{decoder_forward.1}
  #allocation0 [shape = 'u32[]', space=smem, size = 0x4, offset = 0x4, fixed_abs, tag = 'smem constant byte address 0x4 - core index']
  #allocation1 [shape = 'u32[144,128]{1,0:T(1,128)}', space=vmem, size = 0x12000, scoped, tag = 'internal scratch']
  %s0 = inlined_call_operand.vmem [shape: s32[8,1], index: 0, kind: input, shape index: {}]
  %s1 = inlined_call_operand.vmem [shape: bf16[128,128], index: 1, kind: input, shape index: {}]
  %s2 = inlined_call_operand.hbm [shape: bf16[2,128,512], index: 2, kind: input, shape index: {}]
  %s3 = inlined_call_operand.hbm [shape: bf16[2,128,512], index: 3, kind: input, shape index: {}]
  %s4 = inlined_call_operand.hbm [shape: f32[2,1,512], index: 4, kind: input, shape index: {}]
  %s5 = inlined_call_operand.hbm [shape: bf16[128,128], index: 5, kind: input, shape index: {}]
  %s6 = inlined_call_operand.hbm [shape: f32[1,128], index: 6, kind: input, shape index: {}]
  %s7 = inlined_call_operand.vmem [shape: f32[2,8,128], index: 7, kind: input, shape index: {}, may-alias: {7,10}]
  %s8 = inlined_call_operand.vmem [shape: f32[2,8,128], index: 8, kind: input, shape index: {}, may-alias: {8,11}]
  %s9 = inlined_call_operand.vmem [shape: f32[8,128], index: 9, kind: output, shape index: {0}]
  %s10 = inlined_call_operand.vmem [shape: f32[2,8,128], index: 10, kind: output, shape index: {1}, may-alias: {7,10}]
  %s11 = inlined_call_operand.vmem [shape: f32[2,8,128], index: 11, kind: output, shape index: {2}, may-alias: {8,11}]
  %12 = xla_tuple %s9, %s10, %s11
  %s13 = sld [smem:[#allocation0]]
  $region82: #{decoder_forward.1} parent=0
    _
  %s15 = ssub.s32 1, %s13
  %s16 = scalar_select 0, %s15, %s13
  $region1: #{decoder_forward.1} parent=0
    #allocation2 [shape = 'u8[262144]{0}', space=vmem, size = 0x40000, scoped, tag = 'input window, operand 2, single buffered']
    #allocation3 [shape = 's32[1]{0}', space=sflag, size = 0x4, scoped, tag = 'scoped memory for decoder_forward.1']
    #allocation4 [shape = 'u8[262144]{0}', space=vmem, size = 0x40000, scoped, tag = 'input window, operand 3, single buffered']
    #allocation5 [shape = 's32[1]{0}', space=sflag, size = 0x4, scoped, tag = 'scoped memory for decoder_forward.1']
    #allocation6 [shape = 'u8[4096]{0}', space=vmem, size = 0x1000, scoped, tag = 'input window, operand 4, single buffered']
    #allocation7 [shape = 'u8[32768]{0}', space=vmem, size = 0x8000, scoped, tag = 'input window, operand 5, single buffered']
    #allocation8 [shape = 's32[1]{0}', space=sflag, size = 0x4, scoped, tag = 'scoped memory for decoder_forward.1']
    #allocation9 [shape = 'u8[512]{0}', space=vmem, size = 0x400, scoped, tag = 'input window, operand 6, single buffered']
    %17 = vsyncpa [#allocation3], 0
    %18 = vsyncpa [#allocation5], 0
    %19 = vsyncpa [#allocation8], 0
    // Predicated region
    $region2: #{decoder_forward.1} parent=1 // pred_check
      _
    $region3: #{decoder_forward.1} parent=1 // pred_check_branch
      %21 = sbr.rel (0) target = $region5
    $region4: #{decoder_forward.1} parent=1 // pred_region
      _
    $region5: #{decoder_forward.1} parent=1 // pred_fallthru
      _
    // Predicated region
    $region6: #{decoder_forward.1} parent=1 // pred_check
      _
    $region7: #{decoder_forward.1} parent=1 // pred_check_branch
      %23 = sbr.rel (0) target = $region9
    $region8: #{decoder_forward.1} parent=1 // pred_region
      _
    $region9: #{decoder_forward.1} parent=1 // pred_fallthru
      _
    // Predicated region
    $region10: #{decoder_forward.1} parent=1 // pred_check
      _
    $region11: #{decoder_forward.1} parent=1 // pred_check_branch
      %25 = sbr.rel (0) target = $region13
    $region12: #{decoder_forward.1} parent=1 // pred_region
      %s27 = ssub.s32 8192, 8192
      %28 = vsyncadd [#allocation3], %s27
      %s29 = sshll.u32 [#allocation2], 4
      %s30 = int_to_ptr.vmem [resolvable:$true] %s29
      %35 = dma.hbm_to_vmem [thread:$0]  %s2, 8192, %s30, [#allocation3], 256, 256, 16
    $region13: #{decoder_forward.1} parent=1 // pred_fallthru
      _
    // Predicated region
    $region14: #{decoder_forward.1} parent=1 // pred_check
      _
    $region15: #{decoder_forward.1} parent=1 // pred_check_branch
      %37 = sbr.rel (0) target = $region17
    $region16: #{decoder_forward.1} parent=1 // pred_region
      %s39 = ssub.s32 8192, 8192
      %40 = vsyncadd [#allocation5], %s39
      %s41 = sshll.u32 [#allocation4], 4
      %s42 = int_to_ptr.vmem [resolvable:$true] %s41
      %47 = dma.hbm_to_vmem [thread:$0]  %s3, 8192, %s42, [#allocation5], 256, 256, 16
    $region17: #{decoder_forward.1} parent=1 // pred_fallthru
      _
    // Predicated region
    $region18: #{decoder_forward.1} parent=1 // pred_check
      _
    $region19: #{decoder_forward.1} parent=1 // pred_check_branch
      %49 = sbr.rel (0) target = $region21
    $region20: #{decoder_forward.1} parent=1 // pred_region
      %s51 = ssub.s32 128, 128
      %52 = vsyncadd [#allocation5], %s51
      %s53 = sshll.u32 [#allocation6], 4
      %s54 = int_to_ptr.vmem [resolvable:$true] %s53
      %59 = dma.hbm_to_vmem [thread:$0]  %s4, 128, %s54, [#allocation5], 64, 64, 4
    $region21: #{decoder_forward.1} parent=1 // pred_fallthru
      _
    // Predicated region
    $region22: #{decoder_forward.1} parent=1 // pred_check
      _
    $region23: #{decoder_forward.1} parent=1 // pred_check_branch
      %61 = sbr.rel (0) target = $region25
    $region24: #{decoder_forward.1} parent=1 // pred_region
      %s63 = ssub.s32 1024, 1024
      %64 = vsyncadd [#allocation8], %s63
      %s65 = sshll.u32 [#allocation7], 4
      %s66 = int_to_ptr.vmem [resolvable:$true] %s65
      %71 = dma.hbm_to_vmem [thread:$0]  %s5, 1024, %s66, [#allocation8], 64, 64, 4
    $region25: #{decoder_forward.1} parent=1 // pred_fallthru
      _
    // Predicated region
    $region26: #{decoder_forward.1} parent=1 // pred_check
      _
    $region27: #{decoder_forward.1} parent=1 // pred_check_branch
      %73 = sbr.rel (0) target = $region29
    $region28: #{decoder_forward.1} parent=1 // pred_region
      %s75 = ssub.s32 16, 16
      %76 = vsyncadd [#allocation8], %s75
      %s78 = sshll.u32 [#allocation9], 4
      %s79 = int_to_ptr.vmem [resolvable:$true] %s78
      %81 = dma.hbm_to_vmem [thread:$0]  %s6, 16, %s79, [#allocation8]
    $region29: #{decoder_forward.1} parent=1 // pred_fallthru
      _
    // Predicated region
    $region30: #{decoder_forward.1} parent=1 // pred_check
      _
    $region31: #{decoder_forward.1} parent=1 // pred_check_branch
      %83 = sbr.rel (0) target = $region33
    $region32: #{decoder_forward.1} parent=1 // pred_region
      _
    $region33: #{decoder_forward.1} parent=1 // pred_fallthru
      _
    // Predicated region
    $region34: #{decoder_forward.1} parent=1 // pred_check
      _
    $region35: #{decoder_forward.1} parent=1 // pred_check_branch
      %85 = sbr.rel (0) target = $region37
    $region36: #{decoder_forward.1} parent=1 // pred_region
      _
    $region37: #{decoder_forward.1} parent=1 // pred_fallthru
      _
    // Predicated region
    $region38: #{decoder_forward.1} parent=1 // pred_check
      _
    $region39: #{decoder_forward.1} parent=1 // pred_check_branch
      %87 = sbr.rel (0) target = $region41
    $region40: #{decoder_forward.1} parent=1 // pred_region
      %88 = dma.done [#allocation3], 8192
    $region41: #{decoder_forward.1} parent=1 // pred_fallthru
      _
    // Predicated region
    $region42: #{decoder_forward.1} parent=1 // pred_check
      _
    $region43: #{decoder_forward.1} parent=1 // pred_check_branch
      %90 = sbr.rel (0) target = $region45
    $region44: #{decoder_forward.1} parent=1 // pred_region
      %91 = dma.done [#allocation5], 8192
    $region45: #{decoder_forward.1} parent=1 // pred_fallthru
      _
    // Predicated region
    $region46: #{decoder_forward.1} parent=1 // pred_check
      _
    $region47: #{decoder_forward.1} parent=1 // pred_check_branch
      %93 = sbr.rel (0) target = $region49
    $region48: #{decoder_forward.1} parent=1 // pred_region
      %94 = dma.done [#allocation5], 128
    $region49: #{decoder_forward.1} parent=1 // pred_fallthru
      _
    // Predicated region
    $region50: #{decoder_forward.1} parent=1 // pred_check
      _
    $region51: #{decoder_forward.1} parent=1 // pred_check_branch
      %96 = sbr.rel (0) target = $region53
    $region52: #{decoder_forward.1} parent=1 // pred_region
      %97 = dma.done [#allocation8], 1024
    $region53: #{decoder_forward.1} parent=1 // pred_fallthru
      _
    // Predicated region
    $region54: #{decoder_forward.1} parent=1 // pred_check
      _
    $region55: #{decoder_forward.1} parent=1 // pred_check_branch
      %99 = sbr.rel (0) target = $region57
    $region56: #{decoder_forward.1} parent=1 // pred_region
      %100 = dma.done [#allocation8], 16
    $region57: #{decoder_forward.1} parent=1 // pred_fallthru
      _
    %v102 = vld [vmem:[%s0] sm:$0xff]
    %v103 = vlaneseq
    %v104 = vand.u32 %v103, 127
    %105 = vset.pattern.permute.xlu0 0
    %106 = vperm.xlu0 %105, %v102
    %v107 = vpop.permute.xlu0 %106
    %vm108 = vcmp.eq.s32.totalorder %v104, %v107
    %v109 = vsel %vm108, 1.0, 0.0
    %v110 = vpack.c.bf16 %v109, %v109
    %v111 = vld [vmem:[%s1] sm:$0xf]
    %v112 = vld [vmem:[%s1 + $0x4] sm:$0xf]
    %v113 = vld [vmem:[%s1 + $0x8] sm:$0xf]
    %v114 = vld [vmem:[%s1 + $0xc] sm:$0xf]
    %v115 = vld [vmem:[%s1 + $0x10] sm:$0xf]
    %v116 = vld [vmem:[%s1 + $0x14] sm:$0xf]
    %v117 = vld [vmem:[%s1 + $0x18] sm:$0xf]
    %v118 = vld [vmem:[%s1 + $0x1c] sm:$0xf]
    %v119 = vld [vmem:[%s1 + $0x20] sm:$0xf]
    %v120 = vld [vmem:[%s1 + $0x24] sm:$0xf]
    %v121 = vld [vmem:[%s1 + $0x28] sm:$0xf]
    %v122 = vld [vmem:[%s1 + $0x2c] sm:$0xf]
    %v123 = vld [vmem:[%s1 + $0x30] sm:$0xf]
    %v124 = vld [vmem:[%s1 + $0x34] sm:$0xf]
    %v125 = vld [vmem:[%s1 + $0x38] sm:$0xf]
    %v126 = vld [vmem:[%s1 + $0x3c] sm:$0xf]
    %v143 = vunpack.c.l.b16 %v111
    %v144 = vunpack.c.l.b16 %v112
    %v145 = vunpack.c.l.b16 %v113
    %v146 = vunpack.c.l.b16 %v114
    %v147 = vunpack.c.l.b16 %v115
    %v148 = vunpack.c.l.b16 %v116
    %v149 = vunpack.c.l.b16 %v117
    %v150 = vunpack.c.l.b16 %v118
    %v151 = vunpack.c.l.b16 %v119
    %v152 = vunpack.c.l.b16 %v120
    %v153 = vunpack.c.l.b16 %v121
    %v154 = vunpack.c.l.b16 %v122
    %v155 = vunpack.c.l.b16 %v123
    %v156 = vunpack.c.l.b16 %v124
    %v157 = vunpack.c.l.b16 %v125
    %v158 = vunpack.c.l.b16 %v126
    %v159 = vpack.c.b16 %v144, %v143
    %v160 = vpack.c.b16 %v146, %v145
    %v161 = vpack.c.b16 %v148, %v147
    %v162 = vpack.c.b16 %v150, %v149
    %v163 = vpack.c.b16 %v152, %v151
    %v164 = vpack.c.b16 %v154, %v153
    %v165 = vpack.c.b16 %v156, %v155
    %v166 = vpack.c.b16 %v158, %v157
    %175 = vmatprep.subr.bf16.mxu0 0
    %176 = vmatpush1.bf16.msra.mxu0 %v159
    %177 = vmatprep.subr.bf16.mxu0 0
    %178 = vmatpush1.bf16.msra.mxu0 %v160
    %179 = vmatprep.subr.bf16.mxu0 0
    %180 = vmatpush1.bf16.msra.mxu0 %v161
    %181 = vmatprep.subr.bf16.mxu0 0
    %182 = vmatpush1.bf16.msra.mxu0 %v162
    %183 = vmatprep.subr.bf16.mxu0 0
    %184 = vmatpush1.bf16.msra.mxu0 %v163
    %185 = vmatprep.subr.bf16.mxu0 0
    %186 = vmatpush1.bf16.msra.mxu0 %v164
    %187 = vmatprep.subr.bf16.mxu0 0
    %188 = vmatpush1.bf16.msra.mxu0 %v165
    %189 = vmatprep.subr.bf16.mxu0 0
    %190 = vmatpush1.bf16.msra.mxu0 %v166
    %191 = vmatprep.subr.bf16.mxu0 0
    %192 = vmatpush1.bf16.msra.mxu0 0
    %193 = vmatprep.subr.bf16.mxu0 0
    %194 = vmatpush1.bf16.msra.mxu0 0
    %195 = vmatprep.subr.bf16.mxu0 0
    %196 = vmatpush1.bf16.msra.mxu0 0
    %197 = vmatprep.subr.bf16.mxu0 0
    %198 = vmatpush1.bf16.msra.mxu0 0
    %199 = vmatprep.subr.bf16.mxu0 0
    %200 = vmatpush1.bf16.msra.mxu0 0
    %201 = vmatprep.subr.bf16.mxu0 0
    %202 = vmatpush1.bf16.msra.mxu0 0
    %203 = vmatprep.subr.bf16.mxu0 0
    %204 = vmatpush1.bf16.msra.mxu0 0
    %205 = vmatprep.subr.bf16.mxu0 0
    %206 = vmatpush1.bf16.msra.mxu0 0
    %207 = vmatprep.mubr.bf16.mxu0 0
    %208 = vmatmul.mubr.bf16.gmra.mrb[0].mxu0 %v110
    %v209 = vpop.f32.mrb[0].mxu0
    %v210 = vadd.f32 0.0, %v209
    %v211 = vpop.f32.mrb[0].mxu0
    %v212 = vpop.f32.mrb[0].mxu0
    %v213 = vpop.f32.mrb[0].mxu0
    %214 = vdwg.mxu0
    %v215 = vld [vmem:[%s7] sm:$0xff]
    %v216 = vld [vmem:[%s8] sm:$0xff]
    %v217 = vpack.c.bf16 %v210, %v210
    %v218 = vld [vmem:[#allocation2] sm:$0xff]
    %v219 = vld [vmem:[#allocation2 + $0x8] sm:$0xff]
    %v220 = vld [vmem:[#allocation2 + $0x10] sm:$0xff]
    %v221 = vld [vmem:[#allocation2 + $0x18] sm:$0xff]
    %v222 = vld [vmem:[#allocation2 + $0x20] sm:$0xff]
    %v223 = vld [vmem:[#allocation2 + $0x28] sm:$0xff]
    %v224 = vld [vmem:[#allocation2 + $0x30] sm:$0xff]
    %v225 = vld [vmem:[#allocation2 + $0x38] sm:$0xff]
    %v226 = vld [vmem:[#allocation2 + $0x40] sm:$0xff]
    %v227 = vld [vmem:[#allocation2 + $0x48] sm:$0xff]
    %v228 = vld [vmem:[#allocation2 + $0x50] sm:$0xff]
    %v229 = vld [vmem:[#allocation2 + $0x58] sm:$0xff]
    %v230 = vld [vmem:[#allocation2 + $0x60] sm:$0xff]
    %v231 = vld [vmem:[#allocation2 + $0x68] sm:$0xff]
    %v232 = vld [vmem:[#allocation2 + $0x70] sm:$0xff]
    %v233 = vld [vmem:[#allocation2 + $0x78] sm:$0xff]
    %v234 = vld [vmem:[#allocation2 + $0x80] sm:$0xff]
    %v235 = vld [vmem:[#allocation2 + $0x88] sm:$0xff]
    %v236 = vld [vmem:[#allocation2 + $0x90] sm:$0xff]
    %v237 = vld [vmem:[#allocation2 + $0x98] sm:$0xff]
    %v238 = vld [vmem:[#allocation2 + $0xa0] sm:$0xff]
    %v239 = vld [vmem:[#allocation2 + $0xa8] sm:$0xff]
    %v240 = vld [vmem:[#allocation2 + $0xb0] sm:$0xff]
    %v241 = vld [vmem:[#allocation2 + $0xb8] sm:$0xff]
    %v242 = vld [vmem:[#allocation2 + $0xc0] sm:$0xff]
    %v243 = vld [vmem:[#allocation2 + $0xc8] sm:$0xff]
    %v244 = vld [vmem:[#allocation2 + $0xd0] sm:$0xff]
    %v245 = vld [vmem:[#allocation2 + $0xd8] sm:$0xff]
    %v246 = vld [vmem:[#allocation2 + $0xe0] sm:$0xff]
    %v247 = vld [vmem:[#allocation2 + $0xe8] sm:$0xff]
    %v248 = vld [vmem:[#allocation2 + $0xf0] sm:$0xff]
    %v249 = vld [vmem:[#allocation2 + $0xf8] sm:$0xff]
    %v250 = vpack.c.bf16 %v215, %v215
    %v251 = vld [vmem:[#allocation4] sm:$0xff]
    %v252 = vld [vmem:[#allocation4 + $0x8] sm:$0xff]
    %v253 = vld [vmem:[#allocation4 + $0x10] sm:$0xff]
    %v254 = vld [vmem:[#allocation4 + $0x18] sm:$0xff]
    %v255 = vld [vmem:[#allocation4 + $0x20] sm:$0xff]
    %v256 = vld [vmem:[#allocation4 + $0x28] sm:$0xff]
    %v257 = vld [vmem:[#allocation4 + $0x30] sm:$0xff]
    %v258 = vld [vmem:[#allocation4 + $0x38] sm:$0xff]
    %v259 = vld [vmem:[#allocation4 + $0x40] sm:$0xff]
    %v260 = vld [vmem:[#allocation4 + $0x48] sm:$0xff]
    %v261 = vld [vmem:[#allocation4 + $0x50] sm:$0xff]
    %v262 = vld [vmem:[#allocation4 + $0x58] sm:$0xff]
    %v263 = vld [vmem:[#allocation4 + $0x60] sm:$0xff]
    %v264 = vld [vmem:[#allocation4 + $0x68] sm:$0xff]
    %v265 = vld [vmem:[#allocation4 + $0x70] sm:$0xff]
    %v266 = vld [vmem:[#allocation4 + $0x78] sm:$0xff]
    %v267 = vld [vmem:[#allocation4 + $0x80] sm:$0xff]
    %v268 = vld [vmem:[#allocation4 + $0x88] sm:$0xff]
    %v269 = vld [vmem:[#allocation4 + $0x90] sm:$0xff]
    %v270 = vld [vmem:[#allocation4 + $0x98] sm:$0xff]
    %v271 = vld [vmem:[#allocation4 + $0xa0] sm:$0xff]
    %v272 = vld [vmem:[#allocation4 + $0xa8] sm:$0xff]
    %v273 = vld [vmem:[#allocation4 + $0xb0] sm:$0xff]
    %v274 = vld [vmem:[#allocation4 + $0xb8] sm:$0xff]
    %v275 = vld [vmem:[#allocation4 + $0xc0] sm:$0xff]
    %v276 = vld [vmem:[#allocation4 + $0xc8] sm:$0xff]
    %v277 = vld [vmem:[#allocation4 + $0xd0] sm:$0xff]
    %v278 = vld [vmem:[#allocation4 + $0xd8] sm:$0xff]
    %v279 = vld [vmem:[#allocation4 + $0xe0] sm:$0xff]
    %v280 = vld [vmem:[#allocation4 + $0xe8] sm:$0xff]
    %v281 = vld [vmem:[#allocation4 + $0xf0] sm:$0xff]
    %v282 = vld [vmem:[#allocation4 + $0xf8] sm:$0xff]
    %v315 = vunpack.c.l.b16 %v251
    %v316 = vunpack.c.h.b16 %v251
    %v317 = vunpack.c.l.b16 %v252
    %v318 = vunpack.c.h.b16 %v252
    %v319 = vunpack.c.l.b16 %v253
    %v320 = vunpack.c.h.b16 %v253
    %v321 = vunpack.c.l.b16 %v254
    %v322 = vunpack.c.h.b16 %v254
    %v323 = vunpack.c.l.b16 %v255
    %v324 = vunpack.c.h.b16 %v255
    %v325 = vunpack.c.l.b16 %v256
    %v326 = vunpack.c.h.b16 %v256
    %v327 = vunpack.c.l.b16 %v257
    %v328 = vunpack.c.h.b16 %v257
    %v329 = vunpack.c.l.b16 %v258
    %v330 = vunpack.c.h.b16 %v258
    %v331 = vunpack.c.l.b16 %v259
    %v332 = vunpack.c.h.b16 %v259
    %v333 = vunpack.c.l.b16 %v260
    %v334 = vunpack.c.h.b16 %v260
    %v335 = vunpack.c.l.b16 %v261
    %v336 = vunpack.c.h.b16 %v261
    %v337 = vunpack.c.l.b16 %v262
    %v338 = vunpack.c.h.b16 %v262
    %v339 = vunpack.c.l.b16 %v263
    %v340 = vunpack.c.h.b16 %v263
    %v341 = vunpack.c.l.b16 %v264
    %v342 = vunpack.c.h.b16 %v264
    %v343 = vunpack.c.l.b16 %v265
    %v344 = vunpack.c.h.b16 %v265
    %v345 = vunpack.c.l.b16 %v266
    %v346 = vunpack.c.h.b16 %v266
    %v347 = vunpack.c.l.b16 %v267
    %v348 = vunpack.c.h.b16 %v267
    %v349 = vunpack.c.l.b16 %v268
    %v350 = vunpack.c.h.b16 %v268
    %v351 = vunpack.c.l.b16 %v269
    %v352 = vunpack.c.h.b16 %v269
    %v353 = vunpack.c.l.b16 %v270
    %v354 = vunpack.c.h.b16 %v270
    %v355 = vunpack.c.l.b16 %v271
    %v356 = vunpack.c.h.b16 %v271
    %v357 = vunpack.c.l.b16 %v272
    %v358 = vunpack.c.h.b16 %v272
    %v359 = vunpack.c.l.b16 %v273
    %v360 = vunpack.c.h.b16 %v273
    %v361 = vunpack.c.l.b16 %v274
    %v362 = vunpack.c.h.b16 %v274
    %v363 = vunpack.c.l.b16 %v275
    %v364 = vunpack.c.h.b16 %v275
    %v365 = vunpack.c.l.b16 %v276
    %v366 = vunpack.c.h.b16 %v276
    %v367 = vunpack.c.l.b16 %v277
    %v368 = vunpack.c.h.b16 %v277
    %v369 = vunpack.c.l.b16 %v278
    %v370 = vunpack.c.h.b16 %v278
    %v371 = vunpack.c.l.b16 %v279
    %v372 = vunpack.c.h.b16 %v279
    %v373 = vunpack.c.l.b16 %v280
    %v374 = vunpack.c.h.b16 %v280
    %v375 = vunpack.c.l.b16 %v281
    %v376 = vunpack.c.h.b16 %v281
    %v377 = vunpack.c.l.b16 %v282
    %v378 = vunpack.c.h.b16 %v282
    %v379 = vpack.c.b16 %v319, %v315
    %v380 = vpack.c.b16 %v320, %v316
    %v381 = vpack.c.b16 %v321, %v317
    %v382 = vpack.c.b16 %v322, %v318
    %v383 = vpack.c.b16 %v327, %v323
    %v384 = vpack.c.b16 %v328, %v324
    %v385 = vpack.c.b16 %v329, %v325
    %v386 = vpack.c.b16 %v330, %v326
    %v387 = vpack.c.b16 %v335, %v331
    %v388 = vpack.c.b16 %v336, %v332
    %v389 = vpack.c.b16 %v337, %v333
    %v390 = vpack.c.b16 %v338, %v334
    %v391 = vpack.c.b16 %v343, %v339
    %v392 = vpack.c.b16 %v344, %v340
    %v393 = vpack.c.b16 %v345, %v341
    %v394 = vpack.c.b16 %v346, %v342
    %v395 = vpack.c.b16 %v351, %v347
    %v396 = vpack.c.b16 %v352, %v348
    %v397 = vpack.c.b16 %v353, %v349
    %v398 = vpack.c.b16 %v354, %v350
    %v399 = vpack.c.b16 %v359, %v355
    %v400 = vpack.c.b16 %v360, %v356
    %v401 = vpack.c.b16 %v361, %v357
    %v402 = vpack.c.b16 %v362, %v358
    %v403 = vpack.c.b16 %v367, %v363
    %v404 = vpack.c.b16 %v368, %v364
    %v405 = vpack.c.b16 %v369, %v365
    %v406 = vpack.c.b16 %v370, %v366
    %v407 = vpack.c.b16 %v375, %v371
    %v408 = vpack.c.b16 %v376, %v372
    %v409 = vpack.c.b16 %v377, %v373
    %v410 = vpack.c.b16 %v378, %v374
    %443 = vmatprep.subr.bf16.mxu0 %v380
    %444 = vmatpush1.bf16.msra.mxu0 %v379
    %445 = vmatprep.subr.bf16.mxu0 %v384
    %446 = vmatpush1.bf16.msra.mxu0 %v383
    %447 = vmatprep.subr.bf16.mxu0 %v388
    %448 = vmatpush1.bf16.msra.mxu0 %v387
    %449 = vmatprep.subr.bf16.mxu0 %v392
    %450 = vmatpush1.bf16.msra.mxu0 %v391
    %451 = vmatprep.subr.bf16.mxu0 %v396
    %452 = vmatpush1.bf16.msra.mxu0 %v395
    %453 = vmatprep.subr.bf16.mxu0 %v400
    %454 = vmatpush1.bf16.msra.mxu0 %v399
    %455 = vmatprep.subr.bf16.mxu0 %v404
    %456 = vmatpush1.bf16.msra.mxu0 %v403
    %457 = vmatprep.subr.bf16.mxu0 %v408
    %458 = vmatpush1.bf16.msra.mxu0 %v407
    %459 = vmatprep.subr.bf16.mxu0 0
    %460 = vmatpush1.bf16.msra.mxu0 0
    %461 = vmatprep.subr.bf16.mxu0 0
    %462 = vmatpush1.bf16.msra.mxu0 0
    %463 = vmatprep.subr.bf16.mxu0 0
    %464 = vmatpush1.bf16.msra.mxu0 0
    %465 = vmatprep.subr.bf16.mxu0 0
    %466 = vmatpush1.bf16.msra.mxu0 0
    %467 = vmatprep.subr.bf16.mxu0 0
    %468 = vmatpush1.bf16.msra.mxu0 0
    %469 = vmatprep.subr.bf16.mxu0 0
    %470 = vmatpush1.bf16.msra.mxu0 0
    %471 = vmatprep.subr.bf16.mxu0 0
    %472 = vmatpush1.bf16.msra.mxu0 0
    %473 = vmatprep.subr.bf16.mxu0 0
    %474 = vmatpush1.bf16.msra.mxu0 0
    %475 = vmatprep.mubr.bf16.mxu0 0
    %476 = vmatmul.mubr.bf16.gmra.mrb[0].mxu0 %v250
    %v477 = vpop.f32.mrb[0].mxu0
    %v478 = vadd.f32 0.0, %v477
    %v479 = vpop.f32.mrb[0].mxu0
    %v480 = vadd.f32 0.0, %v479
    %v481 = vpop.f32.mrb[0].mxu0
    %v482 = vpop.f32.mrb[0].mxu0
    %483 = vdwg.mxu0
    %484 = vmatprep.subr.bf16.mxu0 %v382
    %485 = vmatpush1.bf16.msra.mxu0 %v381
    %486 = vmatprep.subr.bf16.mxu0 %v386
    %487 = vmatpush1.bf16.msra.mxu0 %v385
    %488 = vmatprep.subr.bf16.mxu0 %v390
    %489 = vmatpush1.bf16.msra.mxu0 %v389
    %490 = vmatprep.subr.bf16.mxu0 %v394
    %491 = vmatpush1.bf16.msra.mxu0 %v393
    %492 = vmatprep.subr.bf16.mxu0 %v398
    %493 = vmatpush1.bf16.msra.mxu0 %v397
    %494 = vmatprep.subr.bf16.mxu0 %v402
    %495 = vmatpush1.bf16.msra.mxu0 %v401
    %496 = vmatprep.subr.bf16.mxu0 %v406
    %497 = vmatpush1.bf16.msra.mxu0 %v405
    %498 = vmatprep.subr.bf16.mxu0 %v410
    %499 = vmatpush1.bf16.msra.mxu0 %v409
    %500 = vmatprep.subr.bf16.mxu0 0
    %501 = vmatpush1.bf16.msra.mxu0 0
    %502 = vmatprep.subr.bf16.mxu0 0
    %503 = vmatpush1.bf16.msra.mxu0 0
    %504 = vmatprep.subr.bf16.mxu0 0
    %505 = vmatpush1.bf16.msra.mxu0 0
    %506 = vmatprep.subr.bf16.mxu0 0
    %507 = vmatpush1.bf16.msra.mxu0 0
    %508 = vmatprep.subr.bf16.mxu0 0
    %509 = vmatpush1.bf16.msra.mxu0 0
    %510 = vmatprep.subr.bf16.mxu0 0
    %511 = vmatpush1.bf16.msra.mxu0 0
    %512 = vmatprep.subr.bf16.mxu0 0
    %513 = vmatpush1.bf16.msra.mxu0 0
    %514 = vmatprep.subr.bf16.mxu0 0
    %515 = vmatpush1.bf16.msra.mxu0 0
    %516 = vmatprep.mubr.bf16.mxu0 0
    %517 = vmatmul.mubr.bf16.gmra.mrb[0].mxu0 %v250
    %v518 = vpop.f32.mrb[0].mxu0
    %v519 = vadd.f32 0.0, %v518
    %v520 = vpop.f32.mrb[0].mxu0
    %v521 = vadd.f32 0.0, %v520
    %v522 = vpop.f32.mrb[0].mxu0
    %v523 = vpop.f32.mrb[0].mxu0
    %524 = vdwg.mxu0
    %v557 = vunpack.c.l.b16 %v218
    %v558 = vunpack.c.h.b16 %v218
    %v559 = vunpack.c.l.b16 %v219
    %v560 = vunpack.c.h.b16 %v219
    %v561 = vunpack.c.l.b16 %v220
    %v562 = vunpack.c.h.b16 %v220
    %v563 = vunpack.c.l.b16 %v221
    %v564 = vunpack.c.h.b16 %v221
    %v565 = vunpack.c.l.b16 %v222
    %v566 = vunpack.c.h.b16 %v222
    %v567 = vunpack.c.l.b16 %v223
    %v568 = vunpack.c.h.b16 %v223
    %v569 = vunpack.c.l.b16 %v224
    %v570 = vunpack.c.h.b16 %v224
    %v571 = vunpack.c.l.b16 %v225
    %v572 = vunpack.c.h.b16 %v225
    %v573 = vunpack.c.l.b16 %v226
    %v574 = vunpack.c.h.b16 %v226
    %v575 = vunpack.c.l.b16 %v227
    %v576 = vunpack.c.h.b16 %v227
    %v577 = vunpack.c.l.b16 %v228
    %v578 = vunpack.c.h.b16 %v228
    %v579 = vunpack.c.l.b16 %v229
    %v580 = vunpack.c.h.b16 %v229
    %v581 = vunpack.c.l.b16 %v230
    %v582 = vunpack.c.h.b16 %v230
    %v583 = vunpack.c.l.b16 %v231
    %v584 = vunpack.c.h.b16 %v231
    %v585 = vunpack.c.l.b16 %v232
    %v586 = vunpack.c.h.b16 %v232
    %v587 = vunpack.c.l.b16 %v233
    %v588 = vunpack.c.h.b16 %v233
    %v589 = vunpack.c.l.b16 %v234
    %v590 = vunpack.c.h.b16 %v234
    %v591 = vunpack.c.l.b16 %v235
    %v592 = vunpack.c.h.b16 %v235
    %v593 = vunpack.c.l.b16 %v236
    %v594 = vunpack.c.h.b16 %v236
    %v595 = vunpack.c.l.b16 %v237
    %v596 = vunpack.c.h.b16 %v237
    %v597 = vunpack.c.l.b16 %v238
    %v598 = vunpack.c.h.b16 %v238
    %v599 = vunpack.c.l.b16 %v239
    %v600 = vunpack.c.h.b16 %v239
    %v601 = vunpack.c.l.b16 %v240
    %v602 = vunpack.c.h.b16 %v240
    %v603 = vunpack.c.l.b16 %v241
    %v604 = vunpack.c.h.b16 %v241
    %v605 = vunpack.c.l.b16 %v242
    %v606 = vunpack.c.h.b16 %v242
    %v607 = vunpack.c.l.b16 %v243
    %v608 = vunpack.c.h.b16 %v243
    %v609 = vunpack.c.l.b16 %v244
    %v610 = vunpack.c.h.b16 %v244
    %v611 = vunpack.c.l.b16 %v245
    %v612 = vunpack.c.h.b16 %v245
    %v613 = vunpack.c.l.b16 %v246
    %v614 = vunpack.c.h.b16 %v246
    %v615 = vunpack.c.l.b16 %v247
    %v616 = vunpack.c.h.b16 %v247
    %v617 = vunpack.c.l.b16 %v248
    %v618 = vunpack.c.h.b16 %v248
    %v619 = vunpack.c.l.b16 %v249
    %v620 = vunpack.c.h.b16 %v249
    %v621 = vpack.c.b16 %v561, %v557
    %v622 = vpack.c.b16 %v562, %v558
    %v623 = vpack.c.b16 %v563, %v559
    %v624 = vpack.c.b16 %v564, %v560
    %v625 = vpack.c.b16 %v569, %v565
    %v626 = vpack.c.b16 %v570, %v566
    %v627 = vpack.c.b16 %v571, %v567
    %v628 = vpack.c.b16 %v572, %v568
    %v629 = vpack.c.b16 %v577, %v573
    %v630 = vpack.c.b16 %v578, %v574
    %v631 = vpack.c.b16 %v579, %v575
    %v632 = vpack.c.b16 %v580, %v576
    %v633 = vpack.c.b16 %v585, %v581
    %v634 = vpack.c.b16 %v586, %v582
    %v635 = vpack.c.b16 %v587, %v583
    %v636 = vpack.c.b16 %v588, %v584
    %v637 = vpack.c.b16 %v593, %v589
    %v638 = vpack.c.b16 %v594, %v590
    %v639 = vpack.c.b16 %v595, %v591
    %v640 = vpack.c.b16 %v596, %v592
    %v641 = vpack.c.b16 %v601, %v597
    %v642 = vpack.c.b16 %v602, %v598
    %v643 = vpack.c.b16 %v603, %v599
    %v644 = vpack.c.b16 %v604, %v600
    %v645 = vpack.c.b16 %v609, %v605
    %v646 = vpack.c.b16 %v610, %v606
    %v647 = vpack.c.b16 %v611, %v607
    %v648 = vpack.c.b16 %v612, %v608
    %v649 = vpack.c.b16 %v617, %v613
    %v650 = vpack.c.b16 %v618, %v614
    %v651 = vpack.c.b16 %v619, %v615
    %v652 = vpack.c.b16 %v620, %v616
    %685 = vmatprep.subr.bf16.mxu0 %v622
    %686 = vmatpush1.bf16.msra.mxu0 %v621
    %687 = vmatprep.subr.bf16.mxu0 %v626
    %688 = vmatpush1.bf16.msra.mxu0 %v625
    %689 = vmatprep.subr.bf16.mxu0 %v630
    %690 = vmatpush1.bf16.msra.mxu0 %v629
    %691 = vmatprep.subr.bf16.mxu0 %v634
    %692 = vmatpush1.bf16.msra.mxu0 %v633
    %693 = vmatprep.subr.bf16.mxu0 %v638
    %694 = vmatpush1.bf16.msra.mxu0 %v637
    %695 = vmatprep.subr.bf16.mxu0 %v642
    %696 = vmatpush1.bf16.msra.mxu0 %v641
    %697 = vmatprep.subr.bf16.mxu0 %v646
    %698 = vmatpush1.bf16.msra.mxu0 %v645
    %699 = vmatprep.subr.bf16.mxu0 %v650
    %700 = vmatpush1.bf16.msra.mxu0 %v649
    %701 = vmatprep.subr.bf16.mxu0 0
    %702 = vmatpush1.bf16.msra.mxu0 0
    %703 = vmatprep.subr.bf16.mxu0 0
    %704 = vmatpush1.bf16.msra.mxu0 0
    %705 = vmatprep.subr.bf16.mxu0 0
    %706 = vmatpush1.bf16.msra.mxu0 0
    %707 = vmatprep.subr.bf16.mxu0 0
    %708 = vmatpush1.bf16.msra.mxu0 0
    %709 = vmatprep.subr.bf16.mxu0 0
    %710 = vmatpush1.bf16.msra.mxu0 0
    %711 = vmatprep.subr.bf16.mxu0 0
    %712 = vmatpush1.bf16.msra.mxu0 0
    %713 = vmatprep.subr.bf16.mxu0 0
    %714 = vmatpush1.bf16.msra.mxu0 0
    %715 = vmatprep.subr.bf16.mxu0 0
    %716 = vmatpush1.bf16.msra.mxu0 0
    %717 = vmatprep.mubr.bf16.mxu0 0
    %718 = vmatmul.mubr.bf16.gmra.mrb[0].mxu0 %v217
    %v719 = vpop.f32.mrb[0].mxu0
    %v720 = vadd.f32 %v478, %v719
    %v721 = vpop.f32.mrb[0].mxu0
    %v722 = vadd.f32 %v480, %v721
    %v723 = vpop.f32.mrb[0].mxu0
    %v724 = vpop.f32.mrb[0].mxu0
    %725 = vdwg.mxu0
    %726 = vmatprep.subr.bf16.mxu0 %v624
    %727 = vmatpush1.bf16.msra.mxu0 %v623
    %728 = vmatprep.subr.bf16.mxu0 %v628
    %729 = vmatpush1.bf16.msra.mxu0 %v627
    %730 = vmatprep.subr.bf16.mxu0 %v632
    %731 = vmatpush1.bf16.msra.mxu0 %v631
    %732 = vmatprep.subr.bf16.mxu0 %v636
    %733 = vmatpush1.bf16.msra.mxu0 %v635
    %734 = vmatprep.subr.bf16.mxu0 %v640
    %735 = vmatpush1.bf16.msra.mxu0 %v639
    %736 = vmatprep.subr.bf16.mxu0 %v644
    %737 = vmatpush1.bf16.msra.mxu0 %v643
    %738 = vmatprep.subr.bf16.mxu0 %v648
    %739 = vmatpush1.bf16.msra.mxu0 %v647
    %740 = vmatprep.subr.bf16.mxu0 %v652
    %741 = vmatpush1.bf16.msra.mxu0 %v651
    %742 = vmatprep.subr.bf16.mxu0 0
    %743 = vmatpush1.bf16.msra.mxu0 0
    %744 = vmatprep.subr.bf16.mxu0 0
    %745 = vmatpush1.bf16.msra.mxu0 0
    %746 = vmatprep.subr.bf16.mxu0 0
    %747 = vmatpush1.bf16.msra.mxu0 0
    %748 = vmatprep.subr.bf16.mxu0 0
    %749 = vmatpush1.bf16.msra.mxu0 0
    %750 = vmatprep.subr.bf16.mxu0 0
    %751 = vmatpush1.bf16.msra.mxu0 0
    %752 = vmatprep.subr.bf16.mxu0 0
    %753 = vmatpush1.bf16.msra.mxu0 0
    %754 = vmatprep.subr.bf16.mxu0 0
    %755 = vmatpush1.bf16.msra.mxu0 0
    %756 = vmatprep.subr.bf16.mxu0 0
    %757 = vmatpush1.bf16.msra.mxu0 0
    %758 = vmatprep.mubr.bf16.mxu0 0
    %759 = vmatmul.mubr.bf16.gmra.mrb[0].mxu0 %v217
    %v760 = vpop.f32.mrb[0].mxu0
    %v761 = vadd.f32 %v519, %v760
    %v762 = vpop.f32.mrb[0].mxu0
    %v763 = vadd.f32 %v521, %v762
    %v764 = vpop.f32.mrb[0].mxu0
    %v765 = vpop.f32.mrb[0].mxu0
    %766 = vdwg.mxu0
    %v767 = vld [vmem:[#allocation6] sm:$0xf]
    %v769 = vlaneseq
    %v770 = vshrl.u32 %v769, 7
    %v771 = vsub.s32 0, %v770
    %v772 = vrot.slane %v767, %v771
    %v773 = vlaneseq
    %v774 = vshrl.u32 %v773, 7
    %v775 = vsub.s32 1, %v774
    %v776 = vrot.slane %v767, %v775
    %v777 = vlaneseq
    %v778 = vshrl.u32 %v777, 7
    %v779 = vsub.s32 2, %v778
    %v780 = vrot.slane %v767, %v779
    %v781 = vlaneseq
    %v782 = vshrl.u32 %v781, 7
    %v783 = vsub.s32 3, %v782
    %v784 = vrot.slane %v767, %v783
    %v789 = vadd.f32 %v720, %v772
    %v790 = vadd.f32 %v722, %v776
    %v791 = vadd.f32 %v761, %v780
    %v792 = vadd.f32 %v763, %v784
    %v793 = vxor.u32 %v789, 2147483648
    %v794 = vmul.f32 %v793, 1.442695
    %v795 = vpow.pop %v794
    %v796 = vadd.f32 %v795, 1.0
    %v797 = vrcp.pop %v796
    %v798 = vmul.f32 1.0, %v797
    %v799 = vxor.u32 %v790, 2147483648
    %v800 = vmul.f32 %v799, 1.442695
    %v801 = vpow.pop %v800
    %v802 = vadd.f32 %v801, 1.0
    %v803 = vrcp.pop %v802
    %v804 = vmul.f32 1.0, %v803
    %v805 = vtanh.pop %v791
    %v806 = vxor.u32 %v792, 2147483648
    %v807 = vmul.f32 %v806, 1.442695
    %v808 = vpow.pop %v807
    %v809 = vadd.f32 %v808, 1.0
    %v810 = vrcp.pop %v809
    %v811 = vmul.f32 1.0, %v810
    %v812 = vmul.f32 %v804, %v216
    %v813 = vmul.f32 %v798, %v805
    %v814 = vadd.f32 %v812, %v813
    %v815 = vtanh.pop %v814
    %v816 = vmul.f32 %v811, %v815
    %817 = vst [vmem:[%s11] sm:$0xff] %v814
    %818 = vst [vmem:[%s10] sm:$0xff] %v816
    %s819 = scalar_lea.vmem %s7, 8
    %v820 = vld [vmem:[%s819] sm:$0xff]
    %s821 = scalar_lea.vmem %s8, 8
    %v822 = vld [vmem:[%s821] sm:$0xff]
    %v823 = vpack.c.bf16 %v816, %v816
    %s824 = scalar_lea.vmem [#allocation2], 256
    %v825 = vld [vmem:[%s824] sm:$0xff]
    %v826 = vld [vmem:[%s824 + $0x8] sm:$0xff]
    %v827 = vld [vmem:[%s824 + $0x10] sm:$0xff]
    %v828 = vld [vmem:[%s824 + $0x18] sm:$0xff]
    %v829 = vld [vmem:[%s824 + $0x20] sm:$0xff]
    %v830 = vld [vmem:[%s824 + $0x28] sm:$0xff]
    %v831 = vld [vmem:[%s824 + $0x30] sm:$0xff]
    %v832 = vld [vmem:[%s824 + $0x38] sm:$0xff]
    %v833 = vld [vmem:[%s824 + $0x40] sm:$0xff]
    %v834 = vld [vmem:[%s824 + $0x48] sm:$0xff]
    %v835 = vld [vmem:[%s824 + $0x50] sm:$0xff]
    %v836 = vld [vmem:[%s824 + $0x58] sm:$0xff]
    %v837 = vld [vmem:[%s824 + $0x60] sm:$0xff]
    %v838 = vld [vmem:[%s824 + $0x68] sm:$0xff]
    %v839 = vld [vmem:[%s824 + $0x70] sm:$0xff]
    %v840 = vld [vmem:[%s824 + $0x78] sm:$0xff]
    %v841 = vld [vmem:[%s824 + $0x80] sm:$0xff]
    %v842 = vld [vmem:[%s824 + $0x88] sm:$0xff]
    %v843 = vld [vmem:[%s824 + $0x90] sm:$0xff]
    %v844 = vld [vmem:[%s824 + $0x98] sm:$0xff]
    %v845 = vld [vmem:[%s824 + $0xa0] sm:$0xff]
    %v846 = vld [vmem:[%s824 + $0xa8] sm:$0xff]
    %v847 = vld [vmem:[%s824 + $0xb0] sm:$0xff]
    %v848 = vld [vmem:[%s824 + $0xb8] sm:$0xff]
    %v849 = vld [vmem:[%s824 + $0xc0] sm:$0xff]
    %v850 = vld [vmem:[%s824 + $0xc8] sm:$0xff]
    %v851 = vld [vmem:[%s824 + $0xd0] sm:$0xff]
    %v852 = vld [vmem:[%s824 + $0xd8] sm:$0xff]
    %v853 = vld [vmem:[%s824 + $0xe0] sm:$0xff]
    %v854 = vld [vmem:[%s824 + $0xe8] sm:$0xff]
    %v855 = vld [vmem:[%s824 + $0xf0] sm:$0xff]
    %v856 = vld [vmem:[%s824 + $0xf8] sm:$0xff]
    %v857 = vpack.c.bf16 %v820, %v820
    %s858 = scalar_lea.vmem [#allocation4], 256
    %v859 = vld [vmem:[%s858] sm:$0xff]
    %v860 = vld [vmem:[%s858 + $0x8] sm:$0xff]
    %v861 = vld [vmem:[%s858 + $0x10] sm:$0xff]
    %v862 = vld [vmem:[%s858 + $0x18] sm:$0xff]
    %v863 = vld [vmem:[%s858 + $0x20] sm:$0xff]
    %v864 = vld [vmem:[%s858 + $0x28] sm:$0xff]
    %v865 = vld [vmem:[%s858 + $0x30] sm:$0xff]
    %v866 = vld [vmem:[%s858 + $0x38] sm:$0xff]
    %v867 = vld [vmem:[%s858 + $0x40] sm:$0xff]
    %v868 = vld [vmem:[%s858 + $0x48] sm:$0xff]
    %v869 = vld [vmem:[%s858 + $0x50] sm:$0xff]
    %v870 = vld [vmem:[%s858 + $0x58] sm:$0xff]
    %v871 = vld [vmem:[%s858 + $0x60] sm:$0xff]
    %v872 = vld [vmem:[%s858 + $0x68] sm:$0xff]
    %v873 = vld [vmem:[%s858 + $0x70] sm:$0xff]
    %v874 = vld [vmem:[%s858 + $0x78] sm:$0xff]
    %v875 = vld [vmem:[%s858 + $0x80] sm:$0xff]
    %v876 = vld [vmem:[%s858 + $0x88] sm:$0xff]
    %v877 = vld [vmem:[%s858 + $0x90] sm:$0xff]
    %v878 = vld [vmem:[%s858 + $0x98] sm:$0xff]
    %v879 = vld [vmem:[%s858 + $0xa0] sm:$0xff]
    %v880 = vld [vmem:[%s858 + $0xa8] sm:$0xff]
    %v881 = vld [vmem:[%s858 + $0xb0] sm:$0xff]
    %v882 = vld [vmem:[%s858 + $0xb8] sm:$0xff]
    %v883 = vld [vmem:[%s858 + $0xc0] sm:$0xff]
    %v884 = vld [vmem:[%s858 + $0xc8] sm:$0xff]
    %v885 = vld [vmem:[%s858 + $0xd0] sm:$0xff]
    %v886 = vld [vmem:[%s858 + $0xd8] sm:$0xff]
    %v887 = vld [vmem:[%s858 + $0xe0] sm:$0xff]
    %v888 = vld [vmem:[%s858 + $0xe8] sm:$0xff]
    %v889 = vld [vmem:[%s858 + $0xf0] sm:$0xff]
    %v890 = vld [vmem:[%s858 + $0xf8] sm:$0xff]
    %v923 = vunpack.c.l.b16 %v859
    %v924 = vunpack.c.h.b16 %v859
    %v925 = vunpack.c.l.b16 %v860
    %v926 = vunpack.c.h.b16 %v860
    %v927 = vunpack.c.l.b16 %v861
    %v928 = vunpack.c.h.b16 %v861
    %v929 = vunpack.c.l.b16 %v862
    %v930 = vunpack.c.h.b16 %v862
    %v931 = vunpack.c.l.b16 %v863
    %v932 = vunpack.c.h.b16 %v863
    %v933 = vunpack.c.l.b16 %v864
    %v934 = vunpack.c.h.b16 %v864
    %v935 = vunpack.c.l.b16 %v865
    %v936 = vunpack.c.h.b16 %v865
    %v937 = vunpack.c.l.b16 %v866
    %v938 = vunpack.c.h.b16 %v866
    %v939 = vunpack.c.l.b16 %v867
    %v940 = vunpack.c.h.b16 %v867
    %v941 = vunpack.c.l.b16 %v868
    %v942 = vunpack.c.h.b16 %v868
    %v943 = vunpack.c.l.b16 %v869
    %v944 = vunpack.c.h.b16 %v869
    %v945 = vunpack.c.l.b16 %v870
    %v946 = vunpack.c.h.b16 %v870
    %v947 = vunpack.c.l.b16 %v871
    %v948 = vunpack.c.h.b16 %v871
    %v949 = vunpack.c.l.b16 %v872
    %v950 = vunpack.c.h.b16 %v872
    %v951 = vunpack.c.l.b16 %v873
    %v952 = vunpack.c.h.b16 %v873
    %v953 = vunpack.c.l.b16 %v874
    %v954 = vunpack.c.h.b16 %v874
    %v955 = vunpack.c.l.b16 %v875
    %v956 = vunpack.c.h.b16 %v875
    %v957 = vunpack.c.l.b16 %v876
    %v958 = vunpack.c.h.b16 %v876
    %v959 = vunpack.c.l.b16 %v877
    %v960 = vunpack.c.h.b16 %v877
    %v961 = vunpack.c.l.b16 %v878
    %v962 = vunpack.c.h.b16 %v878
    %v963 = vunpack.c.l.b16 %v879
    %v964 = vunpack.c.h.b16 %v879
    %v965 = vunpack.c.l.b16 %v880
    %v966 = vunpack.c.h.b16 %v880
    %v967 = vunpack.c.l.b16 %v881
    %v968 = vunpack.c.h.b16 %v881
    %v969 = vunpack.c.l.b16 %v882
    %v970 = vunpack.c.h.b16 %v882
    %v971 = vunpack.c.l.b16 %v883
    %v972 = vunpack.c.h.b16 %v883
    %v973 = vunpack.c.l.b16 %v884
    %v974 = vunpack.c.h.b16 %v884
    %v975 = vunpack.c.l.b16 %v885
    %v976 = vunpack.c.h.b16 %v885
    %v977 = vunpack.c.l.b16 %v886
    %v978 = vunpack.c.h.b16 %v886
    %v979 = vunpack.c.l.b16 %v887
    %v980 = vunpack.c.h.b16 %v887
    %v981 = vunpack.c.l.b16 %v888
    %v982 = vunpack.c.h.b16 %v888
    %v983 = vunpack.c.l.b16 %v889
    %v984 = vunpack.c.h.b16 %v889
    %v985 = vunpack.c.l.b16 %v890
    %v986 = vunpack.c.h.b16 %v890
    %v987 = vpack.c.b16 %v927, %v923
    %v988 = vpack.c.b16 %v928, %v924
    %v989 = vpack.c.b16 %v929, %v925
    %v990 = vpack.c.b16 %v930, %v926
    %v991 = vpack.c.b16 %v935, %v931
    %v992 = vpack.c.b16 %v936, %v932
    %v993 = vpack.c.b16 %v937, %v933
    %v994 = vpack.c.b16 %v938, %v934
    %v995 = vpack.c.b16 %v943, %v939
    %v996 = vpack.c.b16 %v944, %v940
    %v997 = vpack.c.b16 %v945, %v941
    %v998 = vpack.c.b16 %v946, %v942
    %v999 = vpack.c.b16 %v951, %v947
    %v1000 = vpack.c.b16 %v952, %v948
    %v1001 = vpack.c.b16 %v953, %v949
    %v1002 = vpack.c.b16 %v954, %v950
    %v1003 = vpack.c.b16 %v959, %v955
    %v1004 = vpack.c.b16 %v960, %v956
    %v1005 = vpack.c.b16 %v961, %v957
    %v1006 = vpack.c.b16 %v962, %v958
    %v1007 = vpack.c.b16 %v967, %v963
    %v1008 = vpack.c.b16 %v968, %v964
    %v1009 = vpack.c.b16 %v969, %v965
    %v1010 = vpack.c.b16 %v970, %v966
    %v1011 = vpack.c.b16 %v975, %v971
    %v1012 = vpack.c.b16 %v976, %v972
    %v1013 = vpack.c.b16 %v977, %v973
    %v1014 = vpack.c.b16 %v978, %v974
    %v1015 = vpack.c.b16 %v983, %v979
    %v1016 = vpack.c.b16 %v984, %v980
    %v1017 = vpack.c.b16 %v985, %v981
    %v1018 = vpack.c.b16 %v986, %v982
    %1051 = vmatprep.subr.bf16.mxu0 %v988
    %1052 = vmatpush1.bf16.msra.mxu0 %v987
    %1053 = vmatprep.subr.bf16.mxu0 %v992
    %1054 = vmatpush1.bf16.msra.mxu0 %v991
    %1055 = vmatprep.subr.bf16.mxu0 %v996
    %1056 = vmatpush1.bf16.msra.mxu0 %v995
    %1057 = vmatprep.subr.bf16.mxu0 %v1000
    %1058 = vmatpush1.bf16.msra.mxu0 %v999
    %1059 = vmatprep.subr.bf16.mxu0 %v1004
    %1060 = vmatpush1.bf16.msra.mxu0 %v1003
    %1061 = vmatprep.subr.bf16.mxu0 %v1008
    %1062 = vmatpush1.bf16.msra.mxu0 %v1007
    %1063 = vmatprep.subr.bf16.mxu0 %v1012
    %1064 = vmatpush1.bf16.msra.mxu0 %v1011
    %1065 = vmatprep.subr.bf16.mxu0 %v1016
    %1066 = vmatpush1.bf16.msra.mxu0 %v1015
    %1067 = vmatprep.subr.bf16.mxu0 0
    %1068 = vmatpush1.bf16.msra.mxu0 0
    %1069 = vmatprep.subr.bf16.mxu0 0
    %1070 = vmatpush1.bf16.msra.mxu0 0
    %1071 = vmatprep.subr.bf16.mxu0 0
    %1072 = vmatpush1.bf16.msra.mxu0 0
    %1073 = vmatprep.subr.bf16.mxu0 0
    %1074 = vmatpush1.bf16.msra.mxu0 0
    %1075 = vmatprep.subr.bf16.mxu0 0
    %1076 = vmatpush1.bf16.msra.mxu0 0
    %1077 = vmatprep.subr.bf16.mxu0 0
    %1078 = vmatpush1.bf16.msra.mxu0 0
    %1079 = vmatprep.subr.bf16.mxu0 0
    %1080 = vmatpush1.bf16.msra.mxu0 0
    %1081 = vmatprep.subr.bf16.mxu0 0
    %1082 = vmatpush1.bf16.msra.mxu0 0
    %1083 = vmatprep.mubr.bf16.mxu0 0
    %1084 = vmatmul.mubr.bf16.gmra.mrb[0].mxu0 %v857
    %v1085 = vpop.f32.mrb[0].mxu0
    %v1086 = vadd.f32 0.0, %v1085
    %v1087 = vpop.f32.mrb[0].mxu0
    %v1088 = vadd.f32 0.0, %v1087
    %v1089 = vpop.f32.mrb[0].mxu0
    %v1090 = vpop.f32.mrb[0].mxu0
    %1091 = vdwg.mxu0
    %1092 = vmatprep.subr.bf16.mxu0 %v990
    %1093 = vmatpush1.bf16.msra.mxu0 %v989
    %1094 = vmatprep.subr.bf16.mxu0 %v994
    %1095 = vmatpush1.bf16.msra.mxu0 %v993
    %1096 = vmatprep.subr.bf16.mxu0 %v998
    %1097 = vmatpush1.bf16.msra.mxu0 %v997
    %1098 = vmatprep.subr.bf16.mxu0 %v1002
    %1099 = vmatpush1.bf16.msra.mxu0 %v1001
    %1100 = vmatprep.subr.bf16.mxu0 %v1006
    %1101 = vmatpush1.bf16.msra.mxu0 %v1005
    %1102 = vmatprep.subr.bf16.mxu0 %v1010
    %1103 = vmatpush1.bf16.msra.mxu0 %v1009
    %1104 = vmatprep.subr.bf16.mxu0 %v1014
    %1105 = vmatpush1.bf16.msra.mxu0 %v1013
    %1106 = vmatprep.subr.bf16.mxu0 %v1018
    %1107 = vmatpush1.bf16.msra.mxu0 %v1017
    %1108 = vmatprep.subr.bf16.mxu0 0
    %1109 = vmatpush1.bf16.msra.mxu0 0
    %1110 = vmatprep.subr.bf16.mxu0 0
    %1111 = vmatpush1.bf16.msra.mxu0 0
    %1112 = vmatprep.subr.bf16.mxu0 0
    %1113 = vmatpush1.bf16.msra.mxu0 0
    %1114 = vmatprep.subr.bf16.mxu0 0
    %1115 = vmatpush1.bf16.msra.mxu0 0
    %1116 = vmatprep.subr.bf16.mxu0 0
    %1117 = vmatpush1.bf16.msra.mxu0 0
    %1118 = vmatprep.subr.bf16.mxu0 0
    %1119 = vmatpush1.bf16.msra.mxu0 0
    %1120 = vmatprep.subr.bf16.mxu0 0
    %1121 = vmatpush1.bf16.msra.mxu0 0
    %1122 = vmatprep.subr.bf16.mxu0 0
    %1123 = vmatpush1.bf16.msra.mxu0 0
    %1124 = vmatprep.mubr.bf16.mxu0 0
    %1125 = vmatmul.mubr.bf16.gmra.mrb[0].mxu0 %v857
    %v1126 = vpop.f32.mrb[0].mxu0
    %v1127 = vadd.f32 0.0, %v1126
    %v1128 = vpop.f32.mrb[0].mxu0
    %v1129 = vadd.f32 0.0, %v1128
    %v1130 = vpop.f32.mrb[0].mxu0
    %v1131 = vpop.f32.mrb[0].mxu0
    %1132 = vdwg.mxu0
    %v1165 = vunpack.c.l.b16 %v825
    %v1166 = vunpack.c.h.b16 %v825
    %v1167 = vunpack.c.l.b16 %v826
    %v1168 = vunpack.c.h.b16 %v826
    %v1169 = vunpack.c.l.b16 %v827
    %v1170 = vunpack.c.h.b16 %v827
    %v1171 = vunpack.c.l.b16 %v828
    %v1172 = vunpack.c.h.b16 %v828
    %v1173 = vunpack.c.l.b16 %v829
    %v1174 = vunpack.c.h.b16 %v829
    %v1175 = vunpack.c.l.b16 %v830
    %v1176 = vunpack.c.h.b16 %v830
    %v1177 = vunpack.c.l.b16 %v831
    %v1178 = vunpack.c.h.b16 %v831
    %v1179 = vunpack.c.l.b16 %v832
    %v1180 = vunpack.c.h.b16 %v832
    %v1181 = vunpack.c.l.b16 %v833
    %v1182 = vunpack.c.h.b16 %v833
    %v1183 = vunpack.c.l.b16 %v834
    %v1184 = vunpack.c.h.b16 %v834
    %v1185 = vunpack.c.l.b16 %v835
    %v1186 = vunpack.c.h.b16 %v835
    %v1187 = vunpack.c.l.b16 %v836
    %v1188 = vunpack.c.h.b16 %v836
    %v1189 = vunpack.c.l.b16 %v837
    %v1190 = vunpack.c.h.b16 %v837
    %v1191 = vunpack.c.l.b16 %v838
    %v1192 = vunpack.c.h.b16 %v838
    %v1193 = vunpack.c.l.b16 %v839
    %v1194 = vunpack.c.h.b16 %v839
    %v1195 = vunpack.c.l.b16 %v840
    %v1196 = vunpack.c.h.b16 %v840
    %v1197 = vunpack.c.l.b16 %v841
    %v1198 = vunpack.c.h.b16 %v841
    %v1199 = vunpack.c.l.b16 %v842
    %v1200 = vunpack.c.h.b16 %v842
    %v1201 = vunpack.c.l.b16 %v843
    %v1202 = vunpack.c.h.b16 %v843
    %v1203 = vunpack.c.l.b16 %v844
    %v1204 = vunpack.c.h.b16 %v844
    %v1205 = vunpack.c.l.b16 %v845
    %v1206 = vunpack.c.h.b16 %v845
    %v1207 = vunpack.c.l.b16 %v846
    %v1208 = vunpack.c.h.b16 %v846
    %v1209 = vunpack.c.l.b16 %v847
    %v1210 = vunpack.c.h.b16 %v847
    %v1211 = vunpack.c.l.b16 %v848
    %v1212 = vunpack.c.h.b16 %v848
    %v1213 = vunpack.c.l.b16 %v849
    %v1214 = vunpack.c.h.b16 %v849
    %v1215 = vunpack.c.l.b16 %v850
    %v1216 = vunpack.c.h.b16 %v850
    %v1217 = vunpack.c.l.b16 %v851
    %v1218 = vunpack.c.h.b16 %v851
    %v1219 = vunpack.c.l.b16 %v852
    %v1220 = vunpack.c.h.b16 %v852
    %v1221 = vunpack.c.l.b16 %v853
    %v1222 = vunpack.c.h.b16 %v853
    %v1223 = vunpack.c.l.b16 %v854
    %v1224 = vunpack.c.h.b16 %v854
    %v1225 = vunpack.c.l.b16 %v855
    %v1226 = vunpack.c.h.b16 %v855
    %v1227 = vunpack.c.l.b16 %v856
    %v1228 = vunpack.c.h.b16 %v856
    %v1229 = vpack.c.b16 %v1169, %v1165
    %v1230 = vpack.c.b16 %v1170, %v1166
    %v1231 = vpack.c.b16 %v1171, %v1167
    %v1232 = vpack.c.b16 %v1172, %v1168
    %v1233 = vpack.c.b16 %v1177, %v1173
    %v1234 = vpack.c.b16 %v1178, %v1174
    %v1235 = vpack.c.b16 %v1179, %v1175
    %v1236 = vpack.c.b16 %v1180, %v1176
    %v1237 = vpack.c.b16 %v1185, %v1181
    %v1238 = vpack.c.b16 %v1186, %v1182
    %v1239 = vpack.c.b16 %v1187, %v1183
    %v1240 = vpack.c.b16 %v1188, %v1184
    %v1241 = vpack.c.b16 %v1193, %v1189
    %v1242 = vpack.c.b16 %v1194, %v1190
    %v1243 = vpack.c.b16 %v1195, %v1191
    %v1244 = vpack.c.b16 %v1196, %v1192
    %v1245 = vpack.c.b16 %v1201, %v1197
    %v1246 = vpack.c.b16 %v1202, %v1198
    %v1247 = vpack.c.b16 %v1203, %v1199
    %v1248 = vpack.c.b16 %v1204, %v1200
    %v1249 = vpack.c.b16 %v1209, %v1205
    %v1250 = vpack.c.b16 %v1210, %v1206
    %v1251 = vpack.c.b16 %v1211, %v1207
    %v1252 = vpack.c.b16 %v1212, %v1208
    %v1253 = vpack.c.b16 %v1217, %v1213
    %v1254 = vpack.c.b16 %v1218, %v1214
    %v1255 = vpack.c.b16 %v1219, %v1215
    %v1256 = vpack.c.b16 %v1220, %v1216
    %v1257 = vpack.c.b16 %v1225, %v1221
    %v1258 = vpack.c.b16 %v1226, %v1222
    %v1259 = vpack.c.b16 %v1227, %v1223
    %v1260 = vpack.c.b16 %v1228, %v1224
    %1293 = vmatprep.subr.bf16.mxu0 %v1230
    %1294 = vmatpush1.bf16.msra.mxu0 %v1229
    %1295 = vmatprep.subr.bf16.mxu0 %v1234
    %1296 = vmatpush1.bf16.msra.mxu0 %v1233
    %1297 = vmatprep.subr.bf16.mxu0 %v1238
    %1298 = vmatpush1.bf16.msra.mxu0 %v1237
    %1299 = vmatprep.subr.bf16.mxu0 %v1242
    %1300 = vmatpush1.bf16.msra.mxu0 %v1241
    %1301 = vmatprep.subr.bf16.mxu0 %v1246
    %1302 = vmatpush1.bf16.msra.mxu0 %v1245
    %1303 = vmatprep.subr.bf16.mxu0 %v1250
    %1304 = vmatpush1.bf16.msra.mxu0 %v1249
    %1305 = vmatprep.subr.bf16.mxu0 %v1254
    %1306 = vmatpush1.bf16.msra.mxu0 %v1253
    %1307 = vmatprep.subr.bf16.mxu0 %v1258
    %1308 = vmatpush1.bf16.msra.mxu0 %v1257
    %1309 = vmatprep.subr.bf16.mxu0 0
    %1310 = vmatpush1.bf16.msra.mxu0 0
    %1311 = vmatprep.subr.bf16.mxu0 0
    %1312 = vmatpush1.bf16.msra.mxu0 0
    %1313 = vmatprep.subr.bf16.mxu0 0
    %1314 = vmatpush1.bf16.msra.mxu0 0
    %1315 = vmatprep.subr.bf16.mxu0 0
    %1316 = vmatpush1.bf16.msra.mxu0 0
    %1317 = vmatprep.subr.bf16.mxu0 0
    %1318 = vmatpush1.bf16.msra.mxu0 0
    %1319 = vmatprep.subr.bf16.mxu0 0
    %1320 = vmatpush1.bf16.msra.mxu0 0
    %1321 = vmatprep.subr.bf16.mxu0 0
    %1322 = vmatpush1.bf16.msra.mxu0 0
    %1323 = vmatprep.subr.bf16.mxu0 0
    %1324 = vmatpush1.bf16.msra.mxu0 0
    %1325 = vmatprep.mubr.bf16.mxu0 0
    %1326 = vmatmul.mubr.bf16.gmra.mrb[0].mxu0 %v823
    %v1327 = vpop.f32.mrb[0].mxu0
    %v1328 = vadd.f32 %v1086, %v1327
    %v1329 = vpop.f32.mrb[0].mxu0
    %v1330 = vadd.f32 %v1088, %v1329
    %v1331 = vpop.f32.mrb[0].mxu0
    %v1332 = vpop.f32.mrb[0].mxu0
    %1333 = vdwg.mxu0
    %1334 = vmatprep.subr.bf16.mxu0 %v1232
    %1335 = vmatpush1.bf16.msra.mxu0 %v1231
    %1336 = vmatprep.subr.bf16.mxu0 %v1236
    %1337 = vmatpush1.bf16.msra.mxu0 %v1235
    %1338 = vmatprep.subr.bf16.mxu0 %v1240
    %1339 = vmatpush1.bf16.msra.mxu0 %v1239
    %1340 = vmatprep.subr.bf16.mxu0 %v1244
    %1341 = vmatpush1.bf16.msra.mxu0 %v1243
    %1342 = vmatprep.subr.bf16.mxu0 %v1248
    %1343 = vmatpush1.bf16.msra.mxu0 %v1247
    %1344 = vmatprep.subr.bf16.mxu0 %v1252
    %1345 = vmatpush1.bf16.msra.mxu0 %v1251
    %1346 = vmatprep.subr.bf16.mxu0 %v1256
    %1347 = vmatpush1.bf16.msra.mxu0 %v1255
    %1348 = vmatprep.subr.bf16.mxu0 %v1260
    %1349 = vmatpush1.bf16.msra.mxu0 %v1259
    %1350 = vmatprep.subr.bf16.mxu0 0
    %1351 = vmatpush1.bf16.msra.mxu0 0
    %1352 = vmatprep.subr.bf16.mxu0 0
    %1353 = vmatpush1.bf16.msra.mxu0 0
    %1354 = vmatprep.subr.bf16.mxu0 0
    %1355 = vmatpush1.bf16.msra.mxu0 0
    %1356 = vmatprep.subr.bf16.mxu0 0
    %1357 = vmatpush1.bf16.msra.mxu0 0
    %1358 = vmatprep.subr.bf16.mxu0 0
    %1359 = vmatpush1.bf16.msra.mxu0 0
    %1360 = vmatprep.subr.bf16.mxu0 0
    %1361 = vmatpush1.bf16.msra.mxu0 0
    %1362 = vmatprep.subr.bf16.mxu0 0
    %1363 = vmatpush1.bf16.msra.mxu0 0
    %1364 = vmatprep.subr.bf16.mxu0 0
    %1365 = vmatpush1.bf16.msra.mxu0 0
    %1366 = vmatprep.mubr.bf16.mxu0 0
    %1367 = vmatmul.mubr.bf16.gmra.mrb[0].mxu0 %v823
    %v1368 = vpop.f32.mrb[0].mxu0
    %v1369 = vadd.f32 %v1127, %v1368
    %v1370 = vpop.f32.mrb[0].mxu0
    %v1371 = vadd.f32 %v1129, %v1370
    %v1372 = vpop.f32.mrb[0].mxu0
    %v1373 = vpop.f32.mrb[0].mxu0
    %1374 = vdwg.mxu0
    %s1375 = scalar_lea.vmem [#allocation6], 4
    %v1376 = vld [vmem:[%s1375] sm:$0xf]
    %v1378 = vlaneseq
    %v1379 = vshrl.u32 %v1378, 7
    %v1380 = vsub.s32 0, %v1379
    %v1381 = vrot.slane %v1376, %v1380
    %v1382 = vlaneseq
    %v1383 = vshrl.u32 %v1382, 7
    %v1384 = vsub.s32 1, %v1383
    %v1385 = vrot.slane %v1376, %v1384
    %v1386 = vlaneseq
    %v1387 = vshrl.u32 %v1386, 7
    %v1388 = vsub.s32 2, %v1387
    %v1389 = vrot.slane %v1376, %v1388
    %v1390 = vlaneseq
    %v1391 = vshrl.u32 %v1390, 7
    %v1392 = vsub.s32 3, %v1391
    %v1393 = vrot.slane %v1376, %v1392
    %v1398 = vadd.f32 %v1328, %v1381
    %v1399 = vadd.f32 %v1330, %v1385
    %v1400 = vadd.f32 %v1369, %v1389
    %v1401 = vadd.f32 %v1371, %v1393
    %v1402 = vxor.u32 %v1398, 2147483648
    %v1403 = vmul.f32 %v1402, 1.442695
    %v1404 = vpow.pop %v1403
    %v1405 = vadd.f32 %v1404, 1.0
    %v1406 = vrcp.pop %v1405
    %v1407 = vmul.f32 1.0, %v1406
    %v1408 = vxor.u32 %v1399, 2147483648
    %v1409 = vmul.f32 %v1408, 1.442695
    %v1410 = vpow.pop %v1409
    %v1411 = vadd.f32 %v1410, 1.0
    %v1412 = vrcp.pop %v1411
    %v1413 = vmul.f32 1.0, %v1412
    %v1414 = vtanh.pop %v1400
    %v1415 = vxor.u32 %v1401, 2147483648
    %v1416 = vmul.f32 %v1415, 1.442695
    %v1417 = vpow.pop %v1416
    %v1418 = vadd.f32 %v1417, 1.0
    %v1419 = vrcp.pop %v1418
    %v1420 = vmul.f32 1.0, %v1419
    %v1421 = vmul.f32 %v1413, %v822
    %v1422 = vmul.f32 %v1407, %v1414
    %v1423 = vadd.f32 %v1421, %v1422
    %v1424 = vtanh.pop %v1423
    %v1425 = vmul.f32 %v1420, %v1424
    %s1426 = scalar_lea.vmem %s11, 8
    %1427 = vst [vmem:[%s1426] sm:$0xff] %v1423
    %s1428 = scalar_lea.vmem %s10, 8
    %1429 = vst [vmem:[%s1428] sm:$0xff] %v1425
    %v1430 = vpack.c.bf16 %v1425, %v1425
    %v1431 = vld [vmem:[#allocation7] sm:$0xf]
    %v1432 = vld [vmem:[#allocation7 + $0x4] sm:$0xf]
    %v1433 = vld [vmem:[#allocation7 + $0x8] sm:$0xf]
    %v1434 = vld [vmem:[#allocation7 + $0xc] sm:$0xf]
    %v1435 = vld [vmem:[#allocation7 + $0x10] sm:$0xf]
    %v1436 = vld [vmem:[#allocation7 + $0x14] sm:$0xf]
    %v1437 = vld [vmem:[#allocation7 + $0x18] sm:$0xf]
    %v1438 = vld [vmem:[#allocation7 + $0x1c] sm:$0xf]
    %v1439 = vld [vmem:[#allocation7 + $0x20] sm:$0xf]
    %v1440 = vld [vmem:[#allocation7 + $0x24] sm:$0xf]
    %v1441 = vld [vmem:[#allocation7 + $0x28] sm:$0xf]
    %v1442 = vld [vmem:[#allocation7 + $0x2c] sm:$0xf]
    %v1443 = vld [vmem:[#allocation7 + $0x30] sm:$0xf]
    %v1444 = vld [vmem:[#allocation7 + $0x34] sm:$0xf]
    %v1445 = vld [vmem:[#allocation7 + $0x38] sm:$0xf]
    %v1446 = vld [vmem:[#allocation7 + $0x3c] sm:$0xf]
    %v1447 = vld [vmem:[#allocation9] sm:$0x1]
    %v1449 = vlaneseq
    %v1450 = vshrl.u32 %v1449, 7
    %v1451 = vsub.s32 0, %v1450
    %v1452 = vrot.slane %v1447, %v1451
    %v1470 = vunpack.c.l.b16 %v1431
    %v1471 = vunpack.c.l.b16 %v1432
    %v1472 = vunpack.c.l.b16 %v1433
    %v1473 = vunpack.c.l.b16 %v1434
    %v1474 = vunpack.c.l.b16 %v1435
    %v1475 = vunpack.c.l.b16 %v1436
    %v1476 = vunpack.c.l.b16 %v1437
    %v1477 = vunpack.c.l.b16 %v1438
    %v1478 = vunpack.c.l.b16 %v1439
    %v1479 = vunpack.c.l.b16 %v1440
    %v1480 = vunpack.c.l.b16 %v1441
    %v1481 = vunpack.c.l.b16 %v1442
    %v1482 = vunpack.c.l.b16 %v1443
    %v1483 = vunpack.c.l.b16 %v1444
    %v1484 = vunpack.c.l.b16 %v1445
    %v1485 = vunpack.c.l.b16 %v1446
    %v1486 = vpack.c.b16 %v1471, %v1470
    %v1487 = vpack.c.b16 %v1473, %v1472
    %v1488 = vpack.c.b16 %v1475, %v1474
    %v1489 = vpack.c.b16 %v1477, %v1476
    %v1490 = vpack.c.b16 %v1479, %v1478
    %v1491 = vpack.c.b16 %v1481, %v1480
    %v1492 = vpack.c.b16 %v1483, %v1482
    %v1493 = vpack.c.b16 %v1485, %v1484
    %1502 = vmatprep.subr.bf16.mxu0 0
    %1503 = vmatpush1.bf16.msra.mxu0 %v1486
    %1504 = vmatprep.subr.bf16.mxu0 0
    %1505 = vmatpush1.bf16.msra.mxu0 %v1487
    %1506 = vmatprep.subr.bf16.mxu0 0
    %1507 = vmatpush1.bf16.msra.mxu0 %v1488
    %1508 = vmatprep.subr.bf16.mxu0 0
    %1509 = vmatpush1.bf16.msra.mxu0 %v1489
    %1510 = vmatprep.subr.bf16.mxu0 0
    %1511 = vmatpush1.bf16.msra.mxu0 %v1490
    %1512 = vmatprep.subr.bf16.mxu0 0
    %1513 = vmatpush1.bf16.msra.mxu0 %v1491
    %1514 = vmatprep.subr.bf16.mxu0 0
    %1515 = vmatpush1.bf16.msra.mxu0 %v1492
    %1516 = vmatprep.subr.bf16.mxu0 0
    %1517 = vmatpush1.bf16.msra.mxu0 %v1493
    %1518 = vmatprep.subr.bf16.mxu0 0
    %1519 = vmatpush1.bf16.msra.mxu0 0
    %1520 = vmatprep.subr.bf16.mxu0 0
    %1521 = vmatpush1.bf16.msra.mxu0 0
    %1522 = vmatprep.subr.bf16.mxu0 0
    %1523 = vmatpush1.bf16.msra.mxu0 0
    %1524 = vmatprep.subr.bf16.mxu0 0
    %1525 = vmatpush1.bf16.msra.mxu0 0
    %1526 = vmatprep.subr.bf16.mxu0 0
    %1527 = vmatpush1.bf16.msra.mxu0 0
    %1528 = vmatprep.subr.bf16.mxu0 0
    %1529 = vmatpush1.bf16.msra.mxu0 0
    %1530 = vmatprep.subr.bf16.mxu0 0
    %1531 = vmatpush1.bf16.msra.mxu0 0
    %1532 = vmatprep.subr.bf16.mxu0 0
    %1533 = vmatpush1.bf16.msra.mxu0 0
    %1534 = vmatprep.mubr.bf16.mxu0 0
    %1535 = vmatmul.mubr.bf16.gmra.mrb[0].mxu0 %v1430
    %v1536 = vpop.f32.mrb[0].mxu0
    %v1537 = vadd.f32 %v1452, %v1536
    %v1538 = vpop.f32.mrb[0].mxu0
    %v1539 = vpop.f32.mrb[0].mxu0
    %v1540 = vpop.f32.mrb[0].mxu0
    %1541 = vdwg.mxu0
    %1542 = vst [vmem:[%s9] sm:$0xff] %v1537
    // Predicated region
    $region58: #{decoder_forward.1} parent=1 // pred_check
      _
    $region59: #{decoder_forward.1} parent=1 // pred_check_branch
      %1544 = sbr.rel (0) target = $region61
    $region60: #{decoder_forward.1} parent=1 // pred_region
      _
    $region61: #{decoder_forward.1} parent=1 // pred_fallthru
      _
    // Predicated region
    $region62: #{decoder_forward.1} parent=1 // pred_check
      _
    $region63: #{decoder_forward.1} parent=1 // pred_check_branch
      %1546 = sbr.rel (0) target = $region65
    $region64: #{decoder_forward.1} parent=1 // pred_region
      _
    $region65: #{decoder_forward.1} parent=1 // pred_fallthru
      _
    // Predicated region
    $region66: #{decoder_forward.1} parent=1 // pred_check
      _
    $region67: #{decoder_forward.1} parent=1 // pred_check_branch
      %1548 = sbr.rel (0) target = $region69
    $region68: #{decoder_forward.1} parent=1 // pred_region
      _
    $region69: #{decoder_forward.1} parent=1 // pred_fallthru
      _
    // Predicated region
    $region70: #{decoder_forward.1} parent=1 // pred_check
      _
    $region71: #{decoder_forward.1} parent=1 // pred_check_branch
      %1550 = sbr.rel (0) target = $region73
    $region72: #{decoder_forward.1} parent=1 // pred_region
      _
    $region73: #{decoder_forward.1} parent=1 // pred_fallthru
      _
    // Predicated region
    $region74: #{decoder_forward.1} parent=1 // pred_check
      _
    $region75: #{decoder_forward.1} parent=1 // pred_check_branch
      %1552 = sbr.rel (0) target = $region77
    $region76: #{decoder_forward.1} parent=1 // pred_region
      _
    $region77: #{decoder_forward.1} parent=1 // pred_fallthru
      _
    // Predicated region
    $region78: #{decoder_forward.1} parent=1 // pred_check
      _
    $region79: #{decoder_forward.1} parent=1 // pred_check_branch
      %1554 = sbr.rel (0) target = $region81
    $region80: #{decoder_forward.1} parent=1 // pred_region
      _
    $region81: #{decoder_forward.1} parent=1 // pred_fallthru
      _
    %1555 = vsyncpa [#allocation3], 1
    %1556 = vsyncpa [#allocation5], 1
    %1557 = vsyncpa [#allocation8], 1

</llo_original>
